<compile_context>
chip_gen: v6e
topology: v6e:2x2x1
jax: 0.10.0
libtpu: 0.0.40
codegen_flags: <defaults>
</compile_context>

<pallas_src>
import jax
import jax.numpy as jnp
from jax.experimental import pallas as pl
from jax.experimental.pallas import tpu as pltpu

IN_DIM = 2916
HID = 40
OUT_DIM = 1


def _round_up(n, m):
    return ((n + m - 1) // m) * m


def _mlp_kernel(x_ref, w1_ref, b1_ref, w2_ref, b2_ref, w3_ref, b3_ref, o_ref):
    # layer1 + ReLU  (MXU, f32 accumulate)
    h1 = jnp.dot(x_ref[...], w1_ref[...], preferred_element_type=jnp.float32)
    h1 = jnp.maximum(h1 + b1_ref[...], 0.0)
    # layer2 + ReLU
    h2 = jnp.dot(h1, w2_ref[...], preferred_element_type=jnp.float32)
    h2 = jnp.maximum(h2 + b2_ref[...], 0.0)
    # layer3 (no activation)
    out = jnp.dot(h2, w3_ref[...], preferred_element_type=jnp.float32) + b3_ref[...]
    o_ref[...] = out.astype(o_ref.dtype)


def simple_net_forward(x, params, *, tb=512):
    """x: [B, 2916] float32; params: dict of w1,b1,w2,b2,w3,b3 (w in [in,out])."""
    B = x.shape[0]
    w1, b1 = params["w1"], params["b1"]
    w2, b2 = params["w2"], params["b2"]
    w3, b3 = params["w3"], params["b3"]

    # Effective batch tile: 8-aligned (sublane), capped at `tb` rows.
    tb_eff = min(tb, _round_up(B, 8))
    grid = (pl.cdiv(B, tb_eff),)  # partial last block is masked by Pallas

    def resident(shape):
        # weights / biases: same (single) block every grid step -> stay in VMEM
        return pl.BlockSpec(shape, lambda i: (0,) * len(shape))

    flops = 2 * B * (IN_DIM * HID + HID * HID + HID * OUT_DIM)
    bytes_accessed = 4 * (
        B * IN_DIM                      # x streamed in
        + IN_DIM * HID + HID * HID + HID * OUT_DIM  # weights (read once)
        + 2 * HID + OUT_DIM             # biases
        + B * OUT_DIM                   # output
    )

    out = pl.pallas_call(
        _mlp_kernel,
        out_shape=jax.ShapeDtypeStruct((B, OUT_DIM), jnp.float32),
        grid=grid,
        in_specs=[
            pl.BlockSpec((tb_eff, IN_DIM), lambda i: (i, 0)),  # x: streamed per tile
            resident(w1.shape),
            resident(b1.shape),
            resident(w2.shape),
            resident(b2.shape),
            resident(w3.shape),
            resident(b3.shape),
        ],
        out_specs=pl.BlockSpec((tb_eff, OUT_DIM), lambda i: (i, 0)),
        compiler_params=pltpu.CompilerParams(
            dimension_semantics=("parallel",),
            vmem_limit_bytes=32 << 20,
        ),
        cost_estimate=pl.CostEstimate(
            flops=flops, transcendentals=0, bytes_accessed=bytes_accessed
        ),
    )(x, w1, b1, w2, b2, w3, b3)

    return out


def init_params(key):
    """Deterministic init mimicking nn.Linear's U(-1/sqrt(fan_in), 1/sqrt(fan_in))."""
    ks = jax.random.split(key, 6)

    def linear(kw, kb, fan_in, fan_out):
        bound = 1.0 / jnp.sqrt(jnp.float32(fan_in))
        w = jax.random.uniform(kw, (fan_in, fan_out), jnp.float32, -bound, bound)
        b = jax.random.uniform(kb, (1, fan_out), jnp.float32, -bound, bound)
        return w, b

    w1, b1 = linear(ks[0], ks[1], IN_DIM, HID)
    w2, b2 = linear(ks[2], ks[3], HID, HID)
    w3, b3 = linear(ks[4], ks[5], HID, OUT_DIM)
    return {"w1": w1, "b1": b1, "w2": w2, "b2": b2, "w3": w3, "b3": b3}


def reference_forward(x, p):
    h1 = jnp.maximum(x @ p["w1"] + p["b1"], 0.0)
    h2 = jnp.maximum(h1 @ p["w2"] + p["b2"], 0.0)
    return h2 @ p["w3"] + p["b3"]


if __name__ == "__main__":
    key = jax.random.PRNGKey(0)
    kx, kp = jax.random.split(key)
    params = init_params(kp)

    # Small batch (single 8-row tile path).
    B = 8
    x = jax.random.normal(kx, (B, IN_DIM), jnp.float32)
    out = jax.block_until_ready(simple_net_forward(x, params))
    ref = reference_forward(x, params)
    assert out.shape == (B, OUT_DIM)
    assert jnp.allclose(out, ref, atol=1e-4, rtol=1e-4), "mismatch vs reference (small B)"

    # Larger, non-tile-multiple batch: exercises the pipelined multi-tile grid
    # and the masked partial last block (no wrapper-side padding copy of x).
    B2 = 1100
    x2 = jax.random.normal(kx, (B2, IN_DIM), jnp.float32)
    out2 = jax.block_until_ready(simple_net_forward(x2, params, tb=512))
    ref2 = reference_forward(x2, params)
    assert out2.shape == (B2, OUT_DIM)
    assert jnp.allclose(out2, ref2, atol=1e-4, rtol=1e-4), "mismatch vs reference (large B)"

    print("KERNEL_OK")
</pallas_src>

<mosaic_0001>
module attributes {stable_mosaic.version = 11 : i64} {
  func.func @_mlp_kernel(%arg0: i32, %arg1: memref<8x2916xf32, #tpu.memory_space<vmem>>, %arg2: memref<2916x40xf32, #tpu.memory_space<vmem>>, %arg3: memref<1x40xf32, #tpu.memory_space<vmem>>, %arg4: memref<40x40xf32, #tpu.memory_space<vmem>>, %arg5: memref<1x40xf32, #tpu.memory_space<vmem>>, %arg6: memref<40x1xf32, #tpu.memory_space<vmem>>, %arg7: memref<1x1xf32, #tpu.memory_space<vmem>>, %arg8: memref<8x1xf32, #tpu.memory_space<vmem>>) attributes {dimension_semantics = [#tpu.dimension_semantics<parallel>], iteration_bounds = array<i64: 1>, scalar_prefetch = 0 : i64, scratch_operands = 0 : i64, tpu.core_type = #tpu.core_type<tc>, window_params = [{transform_indices = @transform_0, window_bounds = array<i64: 8, 2916>}, {pipeline_mode = #tpu.pipeline_mode<synchronous>, transform_indices = @transform_1, window_bounds = array<i64: 2916, 40>}, {pipeline_mode = #tpu.pipeline_mode<synchronous>, transform_indices = @transform_2, window_bounds = array<i64: 1, 40>}, {pipeline_mode = #tpu.pipeline_mode<synchronous>, transform_indices = @transform_3, window_bounds = array<i64: 40, 40>}, {pipeline_mode = #tpu.pipeline_mode<synchronous>, transform_indices = @transform_4, window_bounds = array<i64: 1, 40>}, {pipeline_mode = #tpu.pipeline_mode<synchronous>, transform_indices = @transform_5, window_bounds = array<i64: 40, 1>}, {pipeline_mode = #tpu.pipeline_mode<synchronous>, transform_indices = @transform_6, window_bounds = array<i64: 1, 1>}, {transform_indices = @transform_7, window_bounds = array<i64: 8, 1>}]} {
    %c0 = arith.constant 0 : index
    %c0_0 = arith.constant 0 : index
    %0 = vector.load %arg1[%c0, %c0_0] : memref<8x2916xf32, #tpu.memory_space<vmem>>, vector<8x2916xf32>
    %c0_1 = arith.constant 0 : index
    %c0_2 = arith.constant 0 : index
    %1 = vector.load %arg2[%c0_1, %c0_2] : memref<2916x40xf32, #tpu.memory_space<vmem>>, vector<2916x40xf32>
    %cst = arith.constant dense<0.000000e+00> : vector<8x40xf32>
    %2 = tpu.matmul %0, %1, %cst {dimension_numbers = #tpu.dot_dimension_numbers<[1], [0], [0], [1], [0, 0, 1, 1], [], []>} : vector<8x2916xf32>, vector<2916x40xf32>, vector<8x40xf32> -> vector<8x40xf32>
    %c0_3 = arith.constant 0 : index
    %c0_4 = arith.constant 0 : index
    %3 = vector.load %arg3[%c0_3, %c0_4] : memref<1x40xf32, #tpu.memory_space<vmem>>, vector<1x40xf32>
    %4 = vector.broadcast %3 : vector<1x40xf32> to vector<8x40xf32>
    %5 = arith.addf %2, %4 : vector<8x40xf32>
    %cst_5 = arith.constant 0.000000e+00 : f32
    %6 = vector.broadcast %cst_5 : f32 to vector<8x40xf32>
    %7 = arith.maximumf %5, %6 : vector<8x40xf32>
    %c0_6 = arith.constant 0 : index
    %c0_7 = arith.constant 0 : index
    %8 = vector.load %arg4[%c0_6, %c0_7] : memref<40x40xf32, #tpu.memory_space<vmem>>, vector<40x40xf32>
    %cst_8 = arith.constant dense<0.000000e+00> : vector<8x40xf32>
    %9 = tpu.matmul %7, %8, %cst_8 {dimension_numbers = #tpu.dot_dimension_numbers<[1], [0], [0], [1], [0, 0, 1, 1], [], []>} : vector<8x40xf32>, vector<40x40xf32>, vector<8x40xf32> -> vector<8x40xf32>
    %c0_9 = arith.constant 0 : index
    %c0_10 = arith.constant 0 : index
    %10 = vector.load %arg5[%c0_9, %c0_10] : memref<1x40xf32, #tpu.memory_space<vmem>>, vector<1x40xf32>
    %11 = vector.broadcast %10 : vector<1x40xf32> to vector<8x40xf32>
    %12 = arith.addf %9, %11 : vector<8x40xf32>
    %cst_11 = arith.constant 0.000000e+00 : f32
    %13 = vector.broadcast %cst_11 : f32 to vector<8x40xf32>
    %14 = arith.maximumf %12, %13 : vector<8x40xf32>
    %c0_12 = arith.constant 0 : index
    %c0_13 = arith.constant 0 : index
    %15 = vector.load %arg6[%c0_12, %c0_13] : memref<40x1xf32, #tpu.memory_space<vmem>>, vector<40x1xf32>
    %cst_14 = arith.constant dense<0.000000e+00> : vector<8x1xf32>
    %16 = tpu.matmul %14, %15, %cst_14 {dimension_numbers = #tpu.dot_dimension_numbers<[1], [0], [0], [1], [0, 0, 1, 1], [], []>} : vector<8x40xf32>, vector<40x1xf32>, vector<8x1xf32> -> vector<8x1xf32>
    %c0_15 = arith.constant 0 : index
    %c0_16 = arith.constant 0 : index
    %17 = vector.load %arg7[%c0_15, %c0_16] : memref<1x1xf32, #tpu.memory_space<vmem>>, vector<1x1xf32>
    %18 = vector.broadcast %17 : vector<1x1xf32> to vector<8x1xf32>
    %19 = arith.addf %16, %18 : vector<8x1xf32>
    %c0_17 = arith.constant 0 : index
    %c0_18 = arith.constant 0 : index
    %20 = vector.load %arg8[%c0_17, %c0_18] : memref<8x1xf32, #tpu.memory_space<vmem>>, vector<8x1xf32>
    tpu.vector_store %arg8[%c0_17, %c0_18], %19 {strides = array<i32>} : memref<8x1xf32, #tpu.memory_space<vmem>>, vector<8x1xf32>,
    return
  }
  func.func @transform_0(%arg0: i32) -> (i32, i32) {
    %c0_i32 = arith.constant 0 : i32
    %c0_i32_0 = arith.constant 0 : i32
    return %arg0, %c0_i32 : i32, i32
  }
  func.func @transform_1(%arg0: i32) -> (i32, i32) {
    %c0_i32 = arith.constant 0 : i32
    %c0_i32_0 = arith.constant 0 : i32
    %c0_i32_1 = arith.constant 0 : i32
    return %c0_i32, %c0_i32_0 : i32, i32
  }
  func.func @transform_2(%arg0: i32) -> (i32, i32) {
    %c0_i32 = arith.constant 0 : i32
    %c0_i32_0 = arith.constant 0 : i32
    %c0_i32_1 = arith.constant 0 : i32
    return %c0_i32, %c0_i32_0 : i32, i32
  }
  func.func @transform_3(%arg0: i32) -> (i32, i32) {
    %c0_i32 = arith.constant 0 : i32
    %c0_i32_0 = arith.constant 0 : i32
    %c0_i32_1 = arith.constant 0 : i32
    return %c0_i32, %c0_i32_0 : i32, i32
  }
  func.func @transform_4(%arg0: i32) -> (i32, i32) {
    %c0_i32 = arith.constant 0 : i32
    %c0_i32_0 = arith.constant 0 : i32
    %c0_i32_1 = arith.constant 0 : i32
    return %c0_i32, %c0_i32_0 : i32, i32
  }
  func.func @transform_5(%arg0: i32) -> (i32, i32) {
    %c0_i32 = arith.constant 0 : i32
    %c0_i32_0 = arith.constant 0 : i32
    %c0_i32_1 = arith.constant 0 : i32
    return %c0_i32, %c0_i32_0 : i32, i32
  }
  func.func @transform_6(%arg0: i32) -> (i32, i32) {
    %c0_i32 = arith.constant 0 : i32
    %c0_i32_0 = arith.constant 0 : i32
    %c0_i32_1 = arith.constant 0 : i32
    return %c0_i32, %c0_i32_0 : i32, i32
  }
  func.func @transform_7(%arg0: i32) -> (i32, i32) {
    %c0_i32 = arith.constant 0 : i32
    %c0_i32_0 = arith.constant 0 : i32
    return %arg0, %c0_i32 : i32, i32
  }
}

</mosaic_0001>

<llo_original>
// kernel: tpu_custom_call.1
$region0: #{tpu_custom_call.1}
  #allocation0 [shape = 'u32[]', space=smem, size = 0x4, offset = 0x4, fixed_abs, tag = 'smem constant byte address 0x4 - core index']
  #allocation1 [shape = 'u32[144,128]{1,0:T(1,128)}', space=vmem, size = 0x12000, scoped, tag = 'internal scratch']
  #allocation2 [shape = 'f32[1,1]{1,0:T(1,128)S(1)}', space=vmem, size = 0x200, scoped, tag = 'scoped memory for tpu_custom_call.1']
  %s0 = inlined_call_operand.vmem [shape: f32[8,2916], index: 0, kind: input, shape index: {}]
  %s1 = inlined_call_operand.vmem [shape: f32[2916,40], index: 1, kind: input, shape index: {}]
  %s2 = inlined_call_operand.vmem [shape: f32[1,40], index: 2, kind: input, shape index: {}]
  %s3 = inlined_call_operand.vmem [shape: f32[40,40], index: 3, kind: input, shape index: {}]
  %s4 = inlined_call_operand.vmem [shape: f32[1,40], index: 4, kind: input, shape index: {}]
  %s5 = inlined_call_operand.vmem [shape: f32[40,1], index: 5, kind: input, shape index: {}]
  %s6 = inlined_call_operand.<no memory space> [shape: f32[1,1], index: 6, kind: input, shape index: {}]
  %s7 = inlined_call_operand.vmem [shape: f32[8,1], index: 7, kind: output, shape index: {}]
  %s8 = sld [smem:[#allocation0]]
  $region38: #{tpu_custom_call.1} parent=0
    _
  %s10 = ssub.s32 1, %s8
  %s11 = scalar_select 0, %s10, %s8
  %v12 = vstv %s6
  %13 = vst [vmem:[#allocation2] sm:$0x1] %v12
  // Predicated region
  $region2: #{tpu_custom_call.1} parent=0 // pred_check
    _
  $region3: #{tpu_custom_call.1} parent=0 // pred_check_branch
    %15 = sbr.rel (0) target = $region5
  $region4: #{tpu_custom_call.1} parent=0 // pred_region
    _
  $region5: #{tpu_custom_call.1} parent=0 // pred_fallthru
    _
  // Predicated region
  $region6: #{tpu_custom_call.1} parent=0 // pred_check
    _
  $region7: #{tpu_custom_call.1} parent=0 // pred_check_branch
    %17 = sbr.rel (0) target = $region9
  $region8: #{tpu_custom_call.1} parent=0 // pred_region
    _
  $region9: #{tpu_custom_call.1} parent=0 // pred_fallthru
    _
  // Predicated region
  $region10: #{tpu_custom_call.1} parent=0 // pred_check
    _
  $region11: #{tpu_custom_call.1} parent=0 // pred_check_branch
    %19 = sbr.rel (0) target = $region13
  $region12: #{tpu_custom_call.1} parent=0 // pred_region
    _
  $region13: #{tpu_custom_call.1} parent=0 // pred_fallthru
    _
  // Predicated region
  $region14: #{tpu_custom_call.1} parent=0 // pred_check
    _
  $region15: #{tpu_custom_call.1} parent=0 // pred_check_branch
    %21 = sbr.rel (0) target = $region17
  $region16: #{tpu_custom_call.1} parent=0 // pred_region
    _
  $region17: #{tpu_custom_call.1} parent=0 // pred_fallthru
    _
  // Predicated region
  $region18: #{tpu_custom_call.1} parent=0 // pred_check
    _
  $region19: #{tpu_custom_call.1} parent=0 // pred_check_branch
    %23 = sbr.rel (0) target = $region21
  $region20: #{tpu_custom_call.1} parent=0 // pred_region
    _
  $region21: #{tpu_custom_call.1} parent=0 // pred_fallthru
    _
  // Predicated region
  $region22: #{tpu_custom_call.1} parent=0 // pred_check
    _
  $region23: #{tpu_custom_call.1} parent=0 // pred_check_branch
    %25 = sbr.rel (0) target = $region25
  $region24: #{tpu_custom_call.1} parent=0 // pred_region
    _
  $region25: #{tpu_custom_call.1} parent=0 // pred_fallthru
    _
  // Predicated region
  $region26: #{tpu_custom_call.1} parent=0 // pred_check
    _
  $region27: #{tpu_custom_call.1} parent=0 // pred_check_branch
    %27 = sbr.rel (0) target = $region29
  $region28: #{tpu_custom_call.1} parent=0 // pred_region
    _
  $region29: #{tpu_custom_call.1} parent=0 // pred_fallthru
    _
  %v28 = vld [vmem:[%s0] sm:$0xff]
  %v29 = vld [vmem:[%s0 + $0x8] sm:$0xff]
  %v30 = vld [vmem:[%s0 + $0x10] sm:$0xff]
  %v31 = vld [vmem:[%s0 + $0x18] sm:$0xff]
  %v32 = vld [vmem:[%s0 + $0x20] sm:$0xff]
  %v33 = vld [vmem:[%s0 + $0x28] sm:$0xff]
  %v34 = vld [vmem:[%s0 + $0x30] sm:$0xff]
  %v35 = vld [vmem:[%s0 + $0x38] sm:$0xff]
  %v36 = vld [vmem:[%s0 + $0x40] sm:$0xff]
  %v37 = vld [vmem:[%s0 + $0x48] sm:$0xff]
  %v38 = vld [vmem:[%s0 + $0x50] sm:$0xff]
  %v39 = vld [vmem:[%s0 + $0x58] sm:$0xff]
  %v40 = vld [vmem:[%s0 + $0x60] sm:$0xff]
  %v41 = vld [vmem:[%s0 + $0x68] sm:$0xff]
  %v42 = vld [vmem:[%s0 + $0x70] sm:$0xff]
  %v43 = vld [vmem:[%s0 + $0x78] sm:$0xff]
  %v44 = vld [vmem:[%s0 + $0x80] sm:$0xff]
  %v45 = vld [vmem:[%s0 + $0x88] sm:$0xff]
  %v46 = vld [vmem:[%s0 + $0x90] sm:$0xff]
  %v47 = vld [vmem:[%s0 + $0x98] sm:$0xff]
  %v48 = vld [vmem:[%s0 + $0xa0] sm:$0xff]
  %v49 = vld [vmem:[%s0 + $0xa8] sm:$0xff]
  %v50 = vld [vmem:[%s0 + $0xb0] sm:$0xff]
  %v51 = vld [vmem:[%s1] sm:$0xff]
  %v52 = vld [vmem:[%s1 + $0x8] sm:$0xff]
  %v53 = vld [vmem:[%s1 + $0x10] sm:$0xff]
  %v54 = vld [vmem:[%s1 + $0x18] sm:$0xff]
  %v55 = vld [vmem:[%s1 + $0x20] sm:$0xff]
  %v56 = vld [vmem:[%s1 + $0x28] sm:$0xff]
  %v57 = vld [vmem:[%s1 + $0x30] sm:$0xff]
  %v58 = vld [vmem:[%s1 + $0x38] sm:$0xff]
  %v59 = vld [vmem:[%s1 + $0x40] sm:$0xff]
  %v60 = vld [vmem:[%s1 + $0x48] sm:$0xff]
  %v61 = vld [vmem:[%s1 + $0x50] sm:$0xff]
  %v62 = vld [vmem:[%s1 + $0x58] sm:$0xff]
  %v63 = vld [vmem:[%s1 + $0x60] sm:$0xff]
  %v64 = vld [vmem:[%s1 + $0x68] sm:$0xff]
  %v65 = vld [vmem:[%s1 + $0x70] sm:$0xff]
  %v66 = vld [vmem:[%s1 + $0x78] sm:$0xff]
  %v67 = vld [vmem:[%s1 + $0x80] sm:$0xff]
  %v68 = vld [vmem:[%s1 + $0x88] sm:$0xff]
  %v69 = vld [vmem:[%s1 + $0x90] sm:$0xff]
  %v70 = vld [vmem:[%s1 + $0x98] sm:$0xff]
  %v71 = vld [vmem:[%s1 + $0xa0] sm:$0xff]
  %v72 = vld [vmem:[%s1 + $0xa8] sm:$0xff]
  %v73 = vld [vmem:[%s1 + $0xb0] sm:$0xff]
  %v74 = vld [vmem:[%s1 + $0xb8] sm:$0xff]
  %v75 = vld [vmem:[%s1 + $0xc0] sm:$0xff]
  %v76 = vld [vmem:[%s1 + $0xc8] sm:$0xff]
  %v77 = vld [vmem:[%s1 + $0xd0] sm:$0xff]
  %v78 = vld [vmem:[%s1 + $0xd8] sm:$0xff]
  %v79 = vld [vmem:[%s1 + $0xe0] sm:$0xff]
  %v80 = vld [vmem:[%s1 + $0xe8] sm:$0xff]
  %v81 = vld [vmem:[%s1 + $0xf0] sm:$0xff]
  %v82 = vld [vmem:[%s1 + $0xf8] sm:$0xff]
  %v83 = vld [vmem:[%s1 + $0x100] sm:$0xff]
  %v84 = vld [vmem:[%s1 + $0x108] sm:$0xff]
  %v85 = vld [vmem:[%s1 + $0x110] sm:$0xff]
  %v86 = vld [vmem:[%s1 + $0x118] sm:$0xff]
  %v87 = vld [vmem:[%s1 + $0x120] sm:$0xff]
  %v88 = vld [vmem:[%s1 + $0x128] sm:$0xff]
  %v89 = vld [vmem:[%s1 + $0x130] sm:$0xff]
  %v90 = vld [vmem:[%s1 + $0x138] sm:$0xff]
  %v91 = vld [vmem:[%s1 + $0x140] sm:$0xff]
  %v92 = vld [vmem:[%s1 + $0x148] sm:$0xff]
  %v93 = vld [vmem:[%s1 + $0x150] sm:$0xff]
  %v94 = vld [vmem:[%s1 + $0x158] sm:$0xff]
  %v95 = vld [vmem:[%s1 + $0x160] sm:$0xff]
  %v96 = vld [vmem:[%s1 + $0x168] sm:$0xff]
  %v97 = vld [vmem:[%s1 + $0x170] sm:$0xff]
  %v98 = vld [vmem:[%s1 + $0x178] sm:$0xff]
  %v99 = vld [vmem:[%s1 + $0x180] sm:$0xff]
  %v100 = vld [vmem:[%s1 + $0x188] sm:$0xff]
  %v101 = vld [vmem:[%s1 + $0x190] sm:$0xff]
  %v102 = vld [vmem:[%s1 + $0x198] sm:$0xff]
  %v103 = vld [vmem:[%s1 + $0x1a0] sm:$0xff]
  %v104 = vld [vmem:[%s1 + $0x1a8] sm:$0xff]
  %v105 = vld [vmem:[%s1 + $0x1b0] sm:$0xff]
  %v106 = vld [vmem:[%s1 + $0x1b8] sm:$0xff]
  %v107 = vld [vmem:[%s1 + $0x1c0] sm:$0xff]
  %v108 = vld [vmem:[%s1 + $0x1c8] sm:$0xff]
  %v109 = vld [vmem:[%s1 + $0x1d0] sm:$0xff]
  %v110 = vld [vmem:[%s1 + $0x1d8] sm:$0xff]
  %v111 = vld [vmem:[%s1 + $0x1e0] sm:$0xff]
  %v112 = vld [vmem:[%s1 + $0x1e8] sm:$0xff]
  %v113 = vld [vmem:[%s1 + $0x1f0] sm:$0xff]
  %v114 = vld [vmem:[%s1 + $0x1f8] sm:$0xff]
  %v115 = vld [vmem:[%s1 + $0x200] sm:$0xff]
  %v116 = vld [vmem:[%s1 + $0x208] sm:$0xff]
  %v117 = vld [vmem:[%s1 + $0x210] sm:$0xff]
  %v118 = vld [vmem:[%s1 + $0x218] sm:$0xff]
  %v119 = vld [vmem:[%s1 + $0x220] sm:$0xff]
  %v120 = vld [vmem:[%s1 + $0x228] sm:$0xff]
  %v121 = vld [vmem:[%s1 + $0x230] sm:$0xff]
  %v122 = vld [vmem:[%s1 + $0x238] sm:$0xff]
  %v123 = vld [vmem:[%s1 + $0x240] sm:$0xff]
  %v124 = vld [vmem:[%s1 + $0x248] sm:$0xff]
  %v125 = vld [vmem:[%s1 + $0x250] sm:$0xff]
  %v126 = vld [vmem:[%s1 + $0x258] sm:$0xff]
  %v127 = vld [vmem:[%s1 + $0x260] sm:$0xff]
  %v128 = vld [vmem:[%s1 + $0x268] sm:$0xff]
  %v129 = vld [vmem:[%s1 + $0x270] sm:$0xff]
  %v130 = vld [vmem:[%s1 + $0x278] sm:$0xff]
  %v131 = vld [vmem:[%s1 + $0x280] sm:$0xff]
  %v132 = vld [vmem:[%s1 + $0x288] sm:$0xff]
  %v133 = vld [vmem:[%s1 + $0x290] sm:$0xff]
  %v134 = vld [vmem:[%s1 + $0x298] sm:$0xff]
  %v135 = vld [vmem:[%s1 + $0x2a0] sm:$0xff]
  %v136 = vld [vmem:[%s1 + $0x2a8] sm:$0xff]
  %v137 = vld [vmem:[%s1 + $0x2b0] sm:$0xff]
  %v138 = vld [vmem:[%s1 + $0x2b8] sm:$0xff]
  %v139 = vld [vmem:[%s1 + $0x2c0] sm:$0xff]
  %v140 = vld [vmem:[%s1 + $0x2c8] sm:$0xff]
  %v141 = vld [vmem:[%s1 + $0x2d0] sm:$0xff]
  %v142 = vld [vmem:[%s1 + $0x2d8] sm:$0xff]
  %v143 = vld [vmem:[%s1 + $0x2e0] sm:$0xff]
  %v144 = vld [vmem:[%s1 + $0x2e8] sm:$0xff]
  %v145 = vld [vmem:[%s1 + $0x2f0] sm:$0xff]
  %v146 = vld [vmem:[%s1 + $0x2f8] sm:$0xff]
  %v147 = vld [vmem:[%s1 + $0x300] sm:$0xff]
  %v148 = vld [vmem:[%s1 + $0x308] sm:$0xff]
  %v149 = vld [vmem:[%s1 + $0x310] sm:$0xff]
  %v150 = vld [vmem:[%s1 + $0x318] sm:$0xff]
  %v151 = vld [vmem:[%s1 + $0x320] sm:$0xff]
  %v152 = vld [vmem:[%s1 + $0x328] sm:$0xff]
  %v153 = vld [vmem:[%s1 + $0x330] sm:$0xff]
  %v154 = vld [vmem:[%s1 + $0x338] sm:$0xff]
  %v155 = vld [vmem:[%s1 + $0x340] sm:$0xff]
  %v156 = vld [vmem:[%s1 + $0x348] sm:$0xff]
  %v157 = vld [vmem:[%s1 + $0x350] sm:$0xff]
  %v158 = vld [vmem:[%s1 + $0x358] sm:$0xff]
  %v159 = vld [vmem:[%s1 + $0x360] sm:$0xff]
  %v160 = vld [vmem:[%s1 + $0x368] sm:$0xff]
  %v161 = vld [vmem:[%s1 + $0x370] sm:$0xff]
  %v162 = vld [vmem:[%s1 + $0x378] sm:$0xff]
  %v163 = vld [vmem:[%s1 + $0x380] sm:$0xff]
  %v164 = vld [vmem:[%s1 + $0x388] sm:$0xff]
  %v165 = vld [vmem:[%s1 + $0x390] sm:$0xff]
  %v166 = vld [vmem:[%s1 + $0x398] sm:$0xff]
  %v167 = vld [vmem:[%s1 + $0x3a0] sm:$0xff]
  %v168 = vld [vmem:[%s1 + $0x3a8] sm:$0xff]
  %v169 = vld [vmem:[%s1 + $0x3b0] sm:$0xff]
  %v170 = vld [vmem:[%s1 + $0x3b8] sm:$0xff]
  %v171 = vld [vmem:[%s1 + $0x3c0] sm:$0xff]
  %v172 = vld [vmem:[%s1 + $0x3c8] sm:$0xff]
  %v173 = vld [vmem:[%s1 + $0x3d0] sm:$0xff]
  %v174 = vld [vmem:[%s1 + $0x3d8] sm:$0xff]
  %v175 = vld [vmem:[%s1 + $0x3e0] sm:$0xff]
  %v176 = vld [vmem:[%s1 + $0x3e8] sm:$0xff]
  %v177 = vld [vmem:[%s1 + $0x3f0] sm:$0xff]
  %v178 = vld [vmem:[%s1 + $0x3f8] sm:$0xff]
  %v179 = vld [vmem:[%s1 + $0x400] sm:$0xff]
  %v180 = vld [vmem:[%s1 + $0x408] sm:$0xff]
  %v181 = vld [vmem:[%s1 + $0x410] sm:$0xff]
  %v182 = vld [vmem:[%s1 + $0x418] sm:$0xff]
  %v183 = vld [vmem:[%s1 + $0x420] sm:$0xff]
  %v184 = vld [vmem:[%s1 + $0x428] sm:$0xff]
  %v185 = vld [vmem:[%s1 + $0x430] sm:$0xff]
  %v186 = vld [vmem:[%s1 + $0x438] sm:$0xff]
  %v187 = vld [vmem:[%s1 + $0x440] sm:$0xff]
  %v188 = vld [vmem:[%s1 + $0x448] sm:$0xff]
  %v189 = vld [vmem:[%s1 + $0x450] sm:$0xff]
  %v190 = vld [vmem:[%s1 + $0x458] sm:$0xff]
  %v191 = vld [vmem:[%s1 + $0x460] sm:$0xff]
  %v192 = vld [vmem:[%s1 + $0x468] sm:$0xff]
  %v193 = vld [vmem:[%s1 + $0x470] sm:$0xff]
  %v194 = vld [vmem:[%s1 + $0x478] sm:$0xff]
  %v195 = vld [vmem:[%s1 + $0x480] sm:$0xff]
  %v196 = vld [vmem:[%s1 + $0x488] sm:$0xff]
  %v197 = vld [vmem:[%s1 + $0x490] sm:$0xff]
  %v198 = vld [vmem:[%s1 + $0x498] sm:$0xff]
  %v199 = vld [vmem:[%s1 + $0x4a0] sm:$0xff]
  %v200 = vld [vmem:[%s1 + $0x4a8] sm:$0xff]
  %v201 = vld [vmem:[%s1 + $0x4b0] sm:$0xff]
  %v202 = vld [vmem:[%s1 + $0x4b8] sm:$0xff]
  %v203 = vld [vmem:[%s1 + $0x4c0] sm:$0xff]
  %v204 = vld [vmem:[%s1 + $0x4c8] sm:$0xff]
  %v205 = vld [vmem:[%s1 + $0x4d0] sm:$0xff]
  %v206 = vld [vmem:[%s1 + $0x4d8] sm:$0xff]
  %v207 = vld [vmem:[%s1 + $0x4e0] sm:$0xff]
  %v208 = vld [vmem:[%s1 + $0x4e8] sm:$0xff]
  %v209 = vld [vmem:[%s1 + $0x4f0] sm:$0xff]
  %v210 = vld [vmem:[%s1 + $0x4f8] sm:$0xff]
  %v211 = vld [vmem:[%s1 + $0x500] sm:$0xff]
  %v212 = vld [vmem:[%s1 + $0x508] sm:$0xff]
  %v213 = vld [vmem:[%s1 + $0x510] sm:$0xff]
  %v214 = vld [vmem:[%s1 + $0x518] sm:$0xff]
  %v215 = vld [vmem:[%s1 + $0x520] sm:$0xff]
  %v216 = vld [vmem:[%s1 + $0x528] sm:$0xff]
  %v217 = vld [vmem:[%s1 + $0x530] sm:$0xff]
  %v218 = vld [vmem:[%s1 + $0x538] sm:$0xff]
  %v219 = vld [vmem:[%s1 + $0x540] sm:$0xff]
  %v220 = vld [vmem:[%s1 + $0x548] sm:$0xff]
  %v221 = vld [vmem:[%s1 + $0x550] sm:$0xff]
  %v222 = vld [vmem:[%s1 + $0x558] sm:$0xff]
  %v223 = vld [vmem:[%s1 + $0x560] sm:$0xff]
  %v224 = vld [vmem:[%s1 + $0x568] sm:$0xff]
  %v225 = vld [vmem:[%s1 + $0x570] sm:$0xff]
  %v226 = vld [vmem:[%s1 + $0x578] sm:$0xff]
  %v227 = vld [vmem:[%s1 + $0x580] sm:$0xff]
  %v228 = vld [vmem:[%s1 + $0x588] sm:$0xff]
  %v229 = vld [vmem:[%s1 + $0x590] sm:$0xff]
  %v230 = vld [vmem:[%s1 + $0x598] sm:$0xff]
  %v231 = vld [vmem:[%s1 + $0x5a0] sm:$0xff]
  %v232 = vld [vmem:[%s1 + $0x5a8] sm:$0xff]
  %v233 = vld [vmem:[%s1 + $0x5b0] sm:$0xff]
  %v234 = vld [vmem:[%s1 + $0x5b8] sm:$0xff]
  %v235 = vld [vmem:[%s1 + $0x5c0] sm:$0xff]
  %v236 = vld [vmem:[%s1 + $0x5c8] sm:$0xff]
  %v237 = vld [vmem:[%s1 + $0x5d0] sm:$0xff]
  %v238 = vld [vmem:[%s1 + $0x5d8] sm:$0xff]
  %v239 = vld [vmem:[%s1 + $0x5e0] sm:$0xff]
  %v240 = vld [vmem:[%s1 + $0x5e8] sm:$0xff]
  %v241 = vld [vmem:[%s1 + $0x5f0] sm:$0xff]
  %v242 = vld [vmem:[%s1 + $0x5f8] sm:$0xff]
  %v243 = vld [vmem:[%s1 + $0x600] sm:$0xff]
  %v244 = vld [vmem:[%s1 + $0x608] sm:$0xff]
  %v245 = vld [vmem:[%s1 + $0x610] sm:$0xff]
  %v246 = vld [vmem:[%s1 + $0x618] sm:$0xff]
  %v247 = vld [vmem:[%s1 + $0x620] sm:$0xff]
  %v248 = vld [vmem:[%s1 + $0x628] sm:$0xff]
  %v249 = vld [vmem:[%s1 + $0x630] sm:$0xff]
  %v250 = vld [vmem:[%s1 + $0x638] sm:$0xff]
  %v251 = vld [vmem:[%s1 + $0x640] sm:$0xff]
  %v252 = vld [vmem:[%s1 + $0x648] sm:$0xff]
  %v253 = vld [vmem:[%s1 + $0x650] sm:$0xff]
  %v254 = vld [vmem:[%s1 + $0x658] sm:$0xff]
  %v255 = vld [vmem:[%s1 + $0x660] sm:$0xff]
  %v256 = vld [vmem:[%s1 + $0x668] sm:$0xff]
  %v257 = vld [vmem:[%s1 + $0x670] sm:$0xff]
  %v258 = vld [vmem:[%s1 + $0x678] sm:$0xff]
  %v259 = vld [vmem:[%s1 + $0x680] sm:$0xff]
  %v260 = vld [vmem:[%s1 + $0x688] sm:$0xff]
  %v261 = vld [vmem:[%s1 + $0x690] sm:$0xff]
  %v262 = vld [vmem:[%s1 + $0x698] sm:$0xff]
  %v263 = vld [vmem:[%s1 + $0x6a0] sm:$0xff]
  %v264 = vld [vmem:[%s1 + $0x6a8] sm:$0xff]
  %v265 = vld [vmem:[%s1 + $0x6b0] sm:$0xff]
  %v266 = vld [vmem:[%s1 + $0x6b8] sm:$0xff]
  %v267 = vld [vmem:[%s1 + $0x6c0] sm:$0xff]
  %v268 = vld [vmem:[%s1 + $0x6c8] sm:$0xff]
  %v269 = vld [vmem:[%s1 + $0x6d0] sm:$0xff]
  %v270 = vld [vmem:[%s1 + $0x6d8] sm:$0xff]
  %v271 = vld [vmem:[%s1 + $0x6e0] sm:$0xff]
  %v272 = vld [vmem:[%s1 + $0x6e8] sm:$0xff]
  %v273 = vld [vmem:[%s1 + $0x6f0] sm:$0xff]
  %v274 = vld [vmem:[%s1 + $0x6f8] sm:$0xff]
  %v275 = vld [vmem:[%s1 + $0x700] sm:$0xff]
  %v276 = vld [vmem:[%s1 + $0x708] sm:$0xff]
  %v277 = vld [vmem:[%s1 + $0x710] sm:$0xff]
  %v278 = vld [vmem:[%s1 + $0x718] sm:$0xff]
  %v279 = vld [vmem:[%s1 + $0x720] sm:$0xff]
  %v280 = vld [vmem:[%s1 + $0x728] sm:$0xff]
  %v281 = vld [vmem:[%s1 + $0x730] sm:$0xff]
  %v282 = vld [vmem:[%s1 + $0x738] sm:$0xff]
  %v283 = vld [vmem:[%s1 + $0x740] sm:$0xff]
  %v284 = vld [vmem:[%s1 + $0x748] sm:$0xff]
  %v285 = vld [vmem:[%s1 + $0x750] sm:$0xff]
  %v286 = vld [vmem:[%s1 + $0x758] sm:$0xff]
  %v287 = vld [vmem:[%s1 + $0x760] sm:$0xff]
  %v288 = vld [vmem:[%s1 + $0x768] sm:$0xff]
  %v289 = vld [vmem:[%s1 + $0x770] sm:$0xff]
  %v290 = vld [vmem:[%s1 + $0x778] sm:$0xff]
  %v291 = vld [vmem:[%s1 + $0x780] sm:$0xff]
  %v292 = vld [vmem:[%s1 + $0x788] sm:$0xff]
  %v293 = vld [vmem:[%s1 + $0x790] sm:$0xff]
  %v294 = vld [vmem:[%s1 + $0x798] sm:$0xff]
  %v295 = vld [vmem:[%s1 + $0x7a0] sm:$0xff]
  %v296 = vld [vmem:[%s1 + $0x7a8] sm:$0xff]
  %v297 = vld [vmem:[%s1 + $0x7b0] sm:$0xff]
  %v298 = vld [vmem:[%s1 + $0x7b8] sm:$0xff]
  %v299 = vld [vmem:[%s1 + $0x7c0] sm:$0xff]
  %v300 = vld [vmem:[%s1 + $0x7c8] sm:$0xff]
  %v301 = vld [vmem:[%s1 + $0x7d0] sm:$0xff]
  %v302 = vld [vmem:[%s1 + $0x7d8] sm:$0xff]
  %v303 = vld [vmem:[%s1 + $0x7e0] sm:$0xff]
  %v304 = vld [vmem:[%s1 + $0x7e8] sm:$0xff]
  %v305 = vld [vmem:[%s1 + $0x7f0] sm:$0xff]
  %v306 = vld [vmem:[%s1 + $0x7f8] sm:$0xff]
  %v307 = vld [vmem:[%s1 + $0x800] sm:$0xff]
  %v308 = vld [vmem:[%s1 + $0x808] sm:$0xff]
  %v309 = vld [vmem:[%s1 + $0x810] sm:$0xff]
  %v310 = vld [vmem:[%s1 + $0x818] sm:$0xff]
  %v311 = vld [vmem:[%s1 + $0x820] sm:$0xff]
  %v312 = vld [vmem:[%s1 + $0x828] sm:$0xff]
  %v313 = vld [vmem:[%s1 + $0x830] sm:$0xff]
  %v314 = vld [vmem:[%s1 + $0x838] sm:$0xff]
  %v315 = vld [vmem:[%s1 + $0x840] sm:$0xff]
  %v316 = vld [vmem:[%s1 + $0x848] sm:$0xff]
  %v317 = vld [vmem:[%s1 + $0x850] sm:$0xff]
  %v318 = vld [vmem:[%s1 + $0x858] sm:$0xff]
  %v319 = vld [vmem:[%s1 + $0x860] sm:$0xff]
  %v320 = vld [vmem:[%s1 + $0x868] sm:$0xff]
  %v321 = vld [vmem:[%s1 + $0x870] sm:$0xff]
  %v322 = vld [vmem:[%s1 + $0x878] sm:$0xff]
  %v323 = vld [vmem:[%s1 + $0x880] sm:$0xff]
  %v324 = vld [vmem:[%s1 + $0x888] sm:$0xff]
  %v325 = vld [vmem:[%s1 + $0x890] sm:$0xff]
  %v326 = vld [vmem:[%s1 + $0x898] sm:$0xff]
  %v327 = vld [vmem:[%s1 + $0x8a0] sm:$0xff]
  %v328 = vld [vmem:[%s1 + $0x8a8] sm:$0xff]
  %v329 = vld [vmem:[%s1 + $0x8b0] sm:$0xff]
  %v330 = vld [vmem:[%s1 + $0x8b8] sm:$0xff]
  %v331 = vld [vmem:[%s1 + $0x8c0] sm:$0xff]
  %v332 = vld [vmem:[%s1 + $0x8c8] sm:$0xff]
  %v333 = vld [vmem:[%s1 + $0x8d0] sm:$0xff]
  %v334 = vld [vmem:[%s1 + $0x8d8] sm:$0xff]
  %v335 = vld [vmem:[%s1 + $0x8e0] sm:$0xff]
  %v336 = vld [vmem:[%s1 + $0x8e8] sm:$0xff]
  %v337 = vld [vmem:[%s1 + $0x8f0] sm:$0xff]
  %v338 = vld [vmem:[%s1 + $0x8f8] sm:$0xff]
  %v339 = vld [vmem:[%s1 + $0x900] sm:$0xff]
  %v340 = vld [vmem:[%s1 + $0x908] sm:$0xff]
  %v341 = vld [vmem:[%s1 + $0x910] sm:$0xff]
  %v342 = vld [vmem:[%s1 + $0x918] sm:$0xff]
  %v343 = vld [vmem:[%s1 + $0x920] sm:$0xff]
  %v344 = vld [vmem:[%s1 + $0x928] sm:$0xff]
  %v345 = vld [vmem:[%s1 + $0x930] sm:$0xff]
  %v346 = vld [vmem:[%s1 + $0x938] sm:$0xff]
  %v347 = vld [vmem:[%s1 + $0x940] sm:$0xff]
  %v348 = vld [vmem:[%s1 + $0x948] sm:$0xff]
  %v349 = vld [vmem:[%s1 + $0x950] sm:$0xff]
  %v350 = vld [vmem:[%s1 + $0x958] sm:$0xff]
  %v351 = vld [vmem:[%s1 + $0x960] sm:$0xff]
  %v352 = vld [vmem:[%s1 + $0x968] sm:$0xff]
  %v353 = vld [vmem:[%s1 + $0x970] sm:$0xff]
  %v354 = vld [vmem:[%s1 + $0x978] sm:$0xff]
  %v355 = vld [vmem:[%s1 + $0x980] sm:$0xff]
  %v356 = vld [vmem:[%s1 + $0x988] sm:$0xff]
  %v357 = vld [vmem:[%s1 + $0x990] sm:$0xff]
  %v358 = vld [vmem:[%s1 + $0x998] sm:$0xff]
  %v359 = vld [vmem:[%s1 + $0x9a0] sm:$0xff]
  %v360 = vld [vmem:[%s1 + $0x9a8] sm:$0xff]
  %v361 = vld [vmem:[%s1 + $0x9b0] sm:$0xff]
  %v362 = vld [vmem:[%s1 + $0x9b8] sm:$0xff]
  %v363 = vld [vmem:[%s1 + $0x9c0] sm:$0xff]
  %v364 = vld [vmem:[%s1 + $0x9c8] sm:$0xff]
  %v365 = vld [vmem:[%s1 + $0x9d0] sm:$0xff]
  %v366 = vld [vmem:[%s1 + $0x9d8] sm:$0xff]
  %v367 = vld [vmem:[%s1 + $0x9e0] sm:$0xff]
  %v368 = vld [vmem:[%s1 + $0x9e8] sm:$0xff]
  %v369 = vld [vmem:[%s1 + $0x9f0] sm:$0xff]
  %v370 = vld [vmem:[%s1 + $0x9f8] sm:$0xff]
  %v371 = vld [vmem:[%s1 + $0xa00] sm:$0xff]
  %v372 = vld [vmem:[%s1 + $0xa08] sm:$0xff]
  %v373 = vld [vmem:[%s1 + $0xa10] sm:$0xff]
  %v374 = vld [vmem:[%s1 + $0xa18] sm:$0xff]
  %v375 = vld [vmem:[%s1 + $0xa20] sm:$0xff]
  %v376 = vld [vmem:[%s1 + $0xa28] sm:$0xff]
  %v377 = vld [vmem:[%s1 + $0xa30] sm:$0xff]
  %v378 = vld [vmem:[%s1 + $0xa38] sm:$0xff]
  %v379 = vld [vmem:[%s1 + $0xa40] sm:$0xff]
  %v380 = vld [vmem:[%s1 + $0xa48] sm:$0xff]
  %v381 = vld [vmem:[%s1 + $0xa50] sm:$0xff]
  %v382 = vld [vmem:[%s1 + $0xa58] sm:$0xff]
  %v383 = vld [vmem:[%s1 + $0xa60] sm:$0xff]
  %v384 = vld [vmem:[%s1 + $0xa68] sm:$0xff]
  %v385 = vld [vmem:[%s1 + $0xa70] sm:$0xff]
  %v386 = vld [vmem:[%s1 + $0xa78] sm:$0xff]
  %v387 = vld [vmem:[%s1 + $0xa80] sm:$0xff]
  %v388 = vld [vmem:[%s1 + $0xa88] sm:$0xff]
  %v389 = vld [vmem:[%s1 + $0xa90] sm:$0xff]
  %v390 = vld [vmem:[%s1 + $0xa98] sm:$0xff]
  %v391 = vld [vmem:[%s1 + $0xaa0] sm:$0xff]
  %v392 = vld [vmem:[%s1 + $0xaa8] sm:$0xff]
  %v393 = vld [vmem:[%s1 + $0xab0] sm:$0xff]
  %v394 = vld [vmem:[%s1 + $0xab8] sm:$0xff]
  %v395 = vld [vmem:[%s1 + $0xac0] sm:$0xff]
  %v396 = vld [vmem:[%s1 + $0xac8] sm:$0xff]
  %v397 = vld [vmem:[%s1 + $0xad0] sm:$0xff]
  %v398 = vld [vmem:[%s1 + $0xad8] sm:$0xff]
  %v399 = vld [vmem:[%s1 + $0xae0] sm:$0xff]
  %v400 = vld [vmem:[%s1 + $0xae8] sm:$0xff]
  %v401 = vld [vmem:[%s1 + $0xaf0] sm:$0xff]
  %v402 = vld [vmem:[%s1 + $0xaf8] sm:$0xff]
  %v403 = vld [vmem:[%s1 + $0xb00] sm:$0xff]
  %v404 = vld [vmem:[%s1 + $0xb08] sm:$0xff]
  %v405 = vld [vmem:[%s1 + $0xb10] sm:$0xff]
  %v406 = vld [vmem:[%s1 + $0xb18] sm:$0xff]
  %v407 = vld [vmem:[%s1 + $0xb20] sm:$0xff]
  %v408 = vld [vmem:[%s1 + $0xb28] sm:$0xff]
  %v409 = vld [vmem:[%s1 + $0xb30] sm:$0xff]
  %v410 = vld [vmem:[%s1 + $0xb38] sm:$0xff]
  %v411 = vld [vmem:[%s1 + $0xb40] sm:$0xff]
  %v412 = vld [vmem:[%s1 + $0xb48] sm:$0xff]
  %v413 = vld [vmem:[%s1 + $0xb50] sm:$0xff]
  %v414 = vld [vmem:[%s1 + $0xb58] sm:$0xff]
  %v415 = vld [vmem:[%s1 + $0xb60] sm:$0xf]
  %v416 = vld [vmem:[%s2] sm:$0x1]
  %v418 = vlaneseq
  %v419 = vshrl.u32 %v418, 7
  %v420 = vsub.s32 0, %v419
  %v421 = vrot.slane %v416, %v420
  %vm423 = vcmask 818176
  %v425 = vsel %vm423, %v50, 0
  %vm427 = vcmask 1043456
  %v429 = vsel %vm427, %v415, 0
  %431 = vmatprep.subr.mxu0 0.0
  %432 = vmatpush1.msra.mxu0 %v66
  %433 = vmatprep.subr.mxu0 0.0
  %434 = vmatpush1.msra.mxu0 %v65
  %435 = vmatprep.subr.mxu0 0.0
  %436 = vmatpush1.msra.mxu0 %v64
  %437 = vmatprep.subr.mxu0 0.0
  %438 = vmatpush1.msra.mxu0 %v63
  %439 = vmatprep.subr.mxu0 0.0
  %440 = vmatpush1.msra.mxu0 %v62
  %441 = vmatprep.subr.mxu0 0.0
  %442 = vmatpush1.msra.mxu0 %v61
  %443 = vmatprep.subr.mxu0 0.0
  %444 = vmatpush1.msra.mxu0 %v60
  %445 = vmatprep.subr.mxu0 0.0
  %446 = vmatpush1.msra.mxu0 %v59
  %447 = vmatprep.subr.mxu0 0.0
  %448 = vmatpush1.msra.mxu0 %v58
  %449 = vmatprep.subr.mxu0 0.0
  %450 = vmatpush1.msra.mxu0 %v57
  %451 = vmatprep.subr.mxu0 0.0
  %452 = vmatpush1.msra.mxu0 %v56
  %453 = vmatprep.subr.mxu0 0.0
  %454 = vmatpush1.msra.mxu0 %v55
  %455 = vmatprep.subr.mxu0 0.0
  %456 = vmatpush1.msra.mxu0 %v54
  %457 = vmatprep.subr.mxu0 0.0
  %458 = vmatpush1.msra.mxu0 %v53
  %459 = vmatprep.subr.mxu0 0.0
  %460 = vmatpush1.msra.mxu0 %v52
  %461 = vmatprep.subr.mxu0 0.0
  %462 = vmatpush1.msra.mxu0 %v51
  %463 = vmatprep.subr.mxu0 0.0
  %464 = vmatpush2.msra.mxu0 %v82
  %465 = vmatprep.subr.mxu0 0.0
  %466 = vmatpush2.msra.mxu0 %v81
  %467 = vmatprep.subr.mxu0 0.0
  %468 = vmatpush2.msra.mxu0 %v80
  %469 = vmatprep.subr.mxu0 0.0
  %470 = vmatpush2.msra.mxu0 %v79
  %471 = vmatprep.subr.mxu0 0.0
  %472 = vmatpush2.msra.mxu0 %v78
  %473 = vmatprep.subr.mxu0 0.0
  %474 = vmatpush2.msra.mxu0 %v77
  %475 = vmatprep.subr.mxu0 0.0
  %476 = vmatpush2.msra.mxu0 %v76
  %477 = vmatprep.subr.mxu0 0.0
  %478 = vmatpush2.msra.mxu0 %v75
  %479 = vmatprep.subr.mxu0 0.0
  %480 = vmatpush2.msra.mxu0 %v74
  %481 = vmatprep.subr.mxu0 0.0
  %482 = vmatpush2.msra.mxu0 %v73
  %483 = vmatprep.subr.mxu0 0.0
  %484 = vmatpush2.msra.mxu0 %v72
  %485 = vmatprep.subr.mxu0 0.0
  %486 = vmatpush2.msra.mxu0 %v71
  %487 = vmatprep.subr.mxu0 0.0
  %488 = vmatpush2.msra.mxu0 %v70
  %489 = vmatprep.subr.mxu0 0.0
  %490 = vmatpush2.msra.mxu0 %v69
  %491 = vmatprep.subr.mxu0 0.0
  %492 = vmatpush2.msra.mxu0 %v68
  %493 = vmatprep.subr.mxu0 0.0
  %494 = vmatpush2.msra.mxu0 %v67
  %495 = vmatprep.mubr.f32.mxu0 %v29
  %496 = vmatmul.mubr.f32.gmra.mxu0 %v28
  %v497 = vpop.f32.mrf.mxu0
  %v498 = vadd.f32 %v421, %v497
  %v499 = vpop.f32.mrf.mxu0
  %500 = vdwg.mxu0
  %501 = vmatprep.subr.mxu0 0.0
  %502 = vmatpush1.msra.mxu0 %v98
  %503 = vmatprep.subr.mxu0 0.0
  %504 = vmatpush1.msra.mxu0 %v97
  %505 = vmatprep.subr.mxu0 0.0
  %506 = vmatpush1.msra.mxu0 %v96
  %507 = vmatprep.subr.mxu0 0.0
  %508 = vmatpush1.msra.mxu0 %v95
  %509 = vmatprep.subr.mxu0 0.0
  %510 = vmatpush1.msra.mxu0 %v94
  %511 = vmatprep.subr.mxu0 0.0
  %512 = vmatpush1.msra.mxu0 %v93
  %513 = vmatprep.subr.mxu0 0.0
  %514 = vmatpush1.msra.mxu0 %v92
  %515 = vmatprep.subr.mxu0 0.0
  %516 = vmatpush1.msra.mxu0 %v91
  %517 = vmatprep.subr.mxu0 0.0
  %518 = vmatpush1.msra.mxu0 %v90
  %519 = vmatprep.subr.mxu0 0.0
  %520 = vmatpush1.msra.mxu0 %v89
  %521 = vmatprep.subr.mxu0 0.0
  %522 = vmatpush1.msra.mxu0 %v88
  %523 = vmatprep.subr.mxu0 0.0
  %524 = vmatpush1.msra.mxu0 %v87
  %525 = vmatprep.subr.mxu0 0.0
  %526 = vmatpush1.msra.mxu0 %v86
  %527 = vmatprep.subr.mxu0 0.0
  %528 = vmatpush1.msra.mxu0 %v85
  %529 = vmatprep.subr.mxu0 0.0
  %530 = vmatpush1.msra.mxu0 %v84
  %531 = vmatprep.subr.mxu0 0.0
  %532 = vmatpush1.msra.mxu0 %v83
  %533 = vmatprep.subr.mxu0 0.0
  %534 = vmatpush2.msra.mxu0 %v114
  %535 = vmatprep.subr.mxu0 0.0
  %536 = vmatpush2.msra.mxu0 %v113
  %537 = vmatprep.subr.mxu0 0.0
  %538 = vmatpush2.msra.mxu0 %v112
  %539 = vmatprep.subr.mxu0 0.0
  %540 = vmatpush2.msra.mxu0 %v111
  %541 = vmatprep.subr.mxu0 0.0
  %542 = vmatpush2.msra.mxu0 %v110
  %543 = vmatprep.subr.mxu0 0.0
  %544 = vmatpush2.msra.mxu0 %v109
  %545 = vmatprep.subr.mxu0 0.0
  %546 = vmatpush2.msra.mxu0 %v108
  %547 = vmatprep.subr.mxu0 0.0
  %548 = vmatpush2.msra.mxu0 %v107
  %549 = vmatprep.subr.mxu0 0.0
  %550 = vmatpush2.msra.mxu0 %v106
  %551 = vmatprep.subr.mxu0 0.0
  %552 = vmatpush2.msra.mxu0 %v105
  %553 = vmatprep.subr.mxu0 0.0
  %554 = vmatpush2.msra.mxu0 %v104
  %555 = vmatprep.subr.mxu0 0.0
  %556 = vmatpush2.msra.mxu0 %v103
  %557 = vmatprep.subr.mxu0 0.0
  %558 = vmatpush2.msra.mxu0 %v102
  %559 = vmatprep.subr.mxu0 0.0
  %560 = vmatpush2.msra.mxu0 %v101
  %561 = vmatprep.subr.mxu0 0.0
  %562 = vmatpush2.msra.mxu0 %v100
  %563 = vmatprep.subr.mxu0 0.0
  %564 = vmatpush2.msra.mxu0 %v99
  %565 = vmatprep.mubr.f32.mxu0 %v31
  %566 = vmatmul.mubr.f32.gmra.mxu0 %v30
  %v567 = vpop.f32.mrf.mxu0
  %v568 = vadd.f32 %v498, %v567
  %v569 = vpop.f32.mrf.mxu0
  %570 = vdwg.mxu0
  %571 = vmatprep.subr.mxu0 0.0
  %572 = vmatpush1.msra.mxu0 %v130
  %573 = vmatprep.subr.mxu0 0.0
  %574 = vmatpush1.msra.mxu0 %v129
  %575 = vmatprep.subr.mxu0 0.0
  %576 = vmatpush1.msra.mxu0 %v128
  %577 = vmatprep.subr.mxu0 0.0
  %578 = vmatpush1.msra.mxu0 %v127
  %579 = vmatprep.subr.mxu0 0.0
  %580 = vmatpush1.msra.mxu0 %v126
  %581 = vmatprep.subr.mxu0 0.0
  %582 = vmatpush1.msra.mxu0 %v125
  %583 = vmatprep.subr.mxu0 0.0
  %584 = vmatpush1.msra.mxu0 %v124
  %585 = vmatprep.subr.mxu0 0.0
  %586 = vmatpush1.msra.mxu0 %v123
  %587 = vmatprep.subr.mxu0 0.0
  %588 = vmatpush1.msra.mxu0 %v122
  %589 = vmatprep.subr.mxu0 0.0
  %590 = vmatpush1.msra.mxu0 %v121
  %591 = vmatprep.subr.mxu0 0.0
  %592 = vmatpush1.msra.mxu0 %v120
  %593 = vmatprep.subr.mxu0 0.0
  %594 = vmatpush1.msra.mxu0 %v119
  %595 = vmatprep.subr.mxu0 0.0
  %596 = vmatpush1.msra.mxu0 %v118
  %597 = vmatprep.subr.mxu0 0.0
  %598 = vmatpush1.msra.mxu0 %v117
  %599 = vmatprep.subr.mxu0 0.0
  %600 = vmatpush1.msra.mxu0 %v116
  %601 = vmatprep.subr.mxu0 0.0
  %602 = vmatpush1.msra.mxu0 %v115
  %603 = vmatprep.subr.mxu0 0.0
  %604 = vmatpush2.msra.mxu0 %v146
  %605 = vmatprep.subr.mxu0 0.0
  %606 = vmatpush2.msra.mxu0 %v145
  %607 = vmatprep.subr.mxu0 0.0
  %608 = vmatpush2.msra.mxu0 %v144
  %609 = vmatprep.subr.mxu0 0.0
  %610 = vmatpush2.msra.mxu0 %v143
  %611 = vmatprep.subr.mxu0 0.0
  %612 = vmatpush2.msra.mxu0 %v142
  %613 = vmatprep.subr.mxu0 0.0
  %614 = vmatpush2.msra.mxu0 %v141
  %615 = vmatprep.subr.mxu0 0.0
  %616 = vmatpush2.msra.mxu0 %v140
  %617 = vmatprep.subr.mxu0 0.0
  %618 = vmatpush2.msra.mxu0 %v139
  %619 = vmatprep.subr.mxu0 0.0
  %620 = vmatpush2.msra.mxu0 %v138
  %621 = vmatprep.subr.mxu0 0.0
  %622 = vmatpush2.msra.mxu0 %v137
  %623 = vmatprep.subr.mxu0 0.0
  %624 = vmatpush2.msra.mxu0 %v136
  %625 = vmatprep.subr.mxu0 0.0
  %626 = vmatpush2.msra.mxu0 %v135
  %627 = vmatprep.subr.mxu0 0.0
  %628 = vmatpush2.msra.mxu0 %v134
  %629 = vmatprep.subr.mxu0 0.0
  %630 = vmatpush2.msra.mxu0 %v133
  %631 = vmatprep.subr.mxu0 0.0
  %632 = vmatpush2.msra.mxu0 %v132
  %633 = vmatprep.subr.mxu0 0.0
  %634 = vmatpush2.msra.mxu0 %v131
  %635 = vmatprep.mubr.f32.mxu0 %v33
  %636 = vmatmul.mubr.f32.gmra.mxu0 %v32
  %v637 = vpop.f32.mrf.mxu0
  %v638 = vadd.f32 %v568, %v637
  %v639 = vpop.f32.mrf.mxu0
  %640 = vdwg.mxu0
  %641 = vmatprep.subr.mxu0 0.0
  %642 = vmatpush1.msra.mxu0 %v162
  %643 = vmatprep.subr.mxu0 0.0
  %644 = vmatpush1.msra.mxu0 %v161
  %645 = vmatprep.subr.mxu0 0.0
  %646 = vmatpush1.msra.mxu0 %v160
  %647 = vmatprep.subr.mxu0 0.0
  %648 = vmatpush1.msra.mxu0 %v159
  %649 = vmatprep.subr.mxu0 0.0
  %650 = vmatpush1.msra.mxu0 %v158
  %651 = vmatprep.subr.mxu0 0.0
  %652 = vmatpush1.msra.mxu0 %v157
  %653 = vmatprep.subr.mxu0 0.0
  %654 = vmatpush1.msra.mxu0 %v156
  %655 = vmatprep.subr.mxu0 0.0
  %656 = vmatpush1.msra.mxu0 %v155
  %657 = vmatprep.subr.mxu0 0.0
  %658 = vmatpush1.msra.mxu0 %v154
  %659 = vmatprep.subr.mxu0 0.0
  %660 = vmatpush1.msra.mxu0 %v153
  %661 = vmatprep.subr.mxu0 0.0
  %662 = vmatpush1.msra.mxu0 %v152
  %663 = vmatprep.subr.mxu0 0.0
  %664 = vmatpush1.msra.mxu0 %v151
  %665 = vmatprep.subr.mxu0 0.0
  %666 = vmatpush1.msra.mxu0 %v150
  %667 = vmatprep.subr.mxu0 0.0
  %668 = vmatpush1.msra.mxu0 %v149
  %669 = vmatprep.subr.mxu0 0.0
  %670 = vmatpush1.msra.mxu0 %v148
  %671 = vmatprep.subr.mxu0 0.0
  %672 = vmatpush1.msra.mxu0 %v147
  %673 = vmatprep.subr.mxu0 0.0
  %674 = vmatpush2.msra.mxu0 %v178
  %675 = vmatprep.subr.mxu0 0.0
  %676 = vmatpush2.msra.mxu0 %v177
  %677 = vmatprep.subr.mxu0 0.0
  %678 = vmatpush2.msra.mxu0 %v176
  %679 = vmatprep.subr.mxu0 0.0
  %680 = vmatpush2.msra.mxu0 %v175
  %681 = vmatprep.subr.mxu0 0.0
  %682 = vmatpush2.msra.mxu0 %v174
  %683 = vmatprep.subr.mxu0 0.0
  %684 = vmatpush2.msra.mxu0 %v173
  %685 = vmatprep.subr.mxu0 0.0
  %686 = vmatpush2.msra.mxu0 %v172
  %687 = vmatprep.subr.mxu0 0.0
  %688 = vmatpush2.msra.mxu0 %v171
  %689 = vmatprep.subr.mxu0 0.0
  %690 = vmatpush2.msra.mxu0 %v170
  %691 = vmatprep.subr.mxu0 0.0
  %692 = vmatpush2.msra.mxu0 %v169
  %693 = vmatprep.subr.mxu0 0.0
  %694 = vmatpush2.msra.mxu0 %v168
  %695 = vmatprep.subr.mxu0 0.0
  %696 = vmatpush2.msra.mxu0 %v167
  %697 = vmatprep.subr.mxu0 0.0
  %698 = vmatpush2.msra.mxu0 %v166
  %699 = vmatprep.subr.mxu0 0.0
  %700 = vmatpush2.msra.mxu0 %v165
  %701 = vmatprep.subr.mxu0 0.0
  %702 = vmatpush2.msra.mxu0 %v164
  %703 = vmatprep.subr.mxu0 0.0
  %704 = vmatpush2.msra.mxu0 %v163
  %705 = vmatprep.mubr.f32.mxu0 %v35
  %706 = vmatmul.mubr.f32.gmra.mxu0 %v34
  %v707 = vpop.f32.mrf.mxu0
  %v708 = vadd.f32 %v638, %v707
  %v709 = vpop.f32.mrf.mxu0
  %710 = vdwg.mxu0
  %711 = vmatprep.subr.mxu0 0.0
  %712 = vmatpush1.msra.mxu0 %v194
  %713 = vmatprep.subr.mxu0 0.0
  %714 = vmatpush1.msra.mxu0 %v193
  %715 = vmatprep.subr.mxu0 0.0
  %716 = vmatpush1.msra.mxu0 %v192
  %717 = vmatprep.subr.mxu0 0.0
  %718 = vmatpush1.msra.mxu0 %v191
  %719 = vmatprep.subr.mxu0 0.0
  %720 = vmatpush1.msra.mxu0 %v190
  %721 = vmatprep.subr.mxu0 0.0
  %722 = vmatpush1.msra.mxu0 %v189
  %723 = vmatprep.subr.mxu0 0.0
  %724 = vmatpush1.msra.mxu0 %v188
  %725 = vmatprep.subr.mxu0 0.0
  %726 = vmatpush1.msra.mxu0 %v187
  %727 = vmatprep.subr.mxu0 0.0
  %728 = vmatpush1.msra.mxu0 %v186
  %729 = vmatprep.subr.mxu0 0.0
  %730 = vmatpush1.msra.mxu0 %v185
  %731 = vmatprep.subr.mxu0 0.0
  %732 = vmatpush1.msra.mxu0 %v184
  %733 = vmatprep.subr.mxu0 0.0
  %734 = vmatpush1.msra.mxu0 %v183
  %735 = vmatprep.subr.mxu0 0.0
  %736 = vmatpush1.msra.mxu0 %v182
  %737 = vmatprep.subr.mxu0 0.0
  %738 = vmatpush1.msra.mxu0 %v181
  %739 = vmatprep.subr.mxu0 0.0
  %740 = vmatpush1.msra.mxu0 %v180
  %741 = vmatprep.subr.mxu0 0.0
  %742 = vmatpush1.msra.mxu0 %v179
  %743 = vmatprep.subr.mxu0 0.0
  %744 = vmatpush2.msra.mxu0 %v210
  %745 = vmatprep.subr.mxu0 0.0
  %746 = vmatpush2.msra.mxu0 %v209
  %747 = vmatprep.subr.mxu0 0.0
  %748 = vmatpush2.msra.mxu0 %v208
  %749 = vmatprep.subr.mxu0 0.0
  %750 = vmatpush2.msra.mxu0 %v207
  %751 = vmatprep.subr.mxu0 0.0
  %752 = vmatpush2.msra.mxu0 %v206
  %753 = vmatprep.subr.mxu0 0.0
  %754 = vmatpush2.msra.mxu0 %v205
  %755 = vmatprep.subr.mxu0 0.0
  %756 = vmatpush2.msra.mxu0 %v204
  %757 = vmatprep.subr.mxu0 0.0
  %758 = vmatpush2.msra.mxu0 %v203
  %759 = vmatprep.subr.mxu0 0.0
  %760 = vmatpush2.msra.mxu0 %v202
  %761 = vmatprep.subr.mxu0 0.0
  %762 = vmatpush2.msra.mxu0 %v201
  %763 = vmatprep.subr.mxu0 0.0
  %764 = vmatpush2.msra.mxu0 %v200
  %765 = vmatprep.subr.mxu0 0.0
  %766 = vmatpush2.msra.mxu0 %v199
  %767 = vmatprep.subr.mxu0 0.0
  %768 = vmatpush2.msra.mxu0 %v198
  %769 = vmatprep.subr.mxu0 0.0
  %770 = vmatpush2.msra.mxu0 %v197
  %771 = vmatprep.subr.mxu0 0.0
  %772 = vmatpush2.msra.mxu0 %v196
  %773 = vmatprep.subr.mxu0 0.0
  %774 = vmatpush2.msra.mxu0 %v195
  %775 = vmatprep.mubr.f32.mxu0 %v37
  %776 = vmatmul.mubr.f32.gmra.mxu0 %v36
  %v777 = vpop.f32.mrf.mxu0
  %v778 = vadd.f32 %v708, %v777
  %v779 = vpop.f32.mrf.mxu0
  %780 = vdwg.mxu0
  %781 = vmatprep.subr.mxu0 0.0
  %782 = vmatpush1.msra.mxu0 %v226
  %783 = vmatprep.subr.mxu0 0.0
  %784 = vmatpush1.msra.mxu0 %v225
  %785 = vmatprep.subr.mxu0 0.0
  %786 = vmatpush1.msra.mxu0 %v224
  %787 = vmatprep.subr.mxu0 0.0
  %788 = vmatpush1.msra.mxu0 %v223
  %789 = vmatprep.subr.mxu0 0.0
  %790 = vmatpush1.msra.mxu0 %v222
  %791 = vmatprep.subr.mxu0 0.0
  %792 = vmatpush1.msra.mxu0 %v221
  %793 = vmatprep.subr.mxu0 0.0
  %794 = vmatpush1.msra.mxu0 %v220
  %795 = vmatprep.subr.mxu0 0.0
  %796 = vmatpush1.msra.mxu0 %v219
  %797 = vmatprep.subr.mxu0 0.0
  %798 = vmatpush1.msra.mxu0 %v218
  %799 = vmatprep.subr.mxu0 0.0
  %800 = vmatpush1.msra.mxu0 %v217
  %801 = vmatprep.subr.mxu0 0.0
  %802 = vmatpush1.msra.mxu0 %v216
  %803 = vmatprep.subr.mxu0 0.0
  %804 = vmatpush1.msra.mxu0 %v215
  %805 = vmatprep.subr.mxu0 0.0
  %806 = vmatpush1.msra.mxu0 %v214
  %807 = vmatprep.subr.mxu0 0.0
  %808 = vmatpush1.msra.mxu0 %v213
  %809 = vmatprep.subr.mxu0 0.0
  %810 = vmatpush1.msra.mxu0 %v212
  %811 = vmatprep.subr.mxu0 0.0
  %812 = vmatpush1.msra.mxu0 %v211
  %813 = vmatprep.subr.mxu0 0.0
  %814 = vmatpush2.msra.mxu0 %v242
  %815 = vmatprep.subr.mxu0 0.0
  %816 = vmatpush2.msra.mxu0 %v241
  %817 = vmatprep.subr.mxu0 0.0
  %818 = vmatpush2.msra.mxu0 %v240
  %819 = vmatprep.subr.mxu0 0.0
  %820 = vmatpush2.msra.mxu0 %v239
  %821 = vmatprep.subr.mxu0 0.0
  %822 = vmatpush2.msra.mxu0 %v238
  %823 = vmatprep.subr.mxu0 0.0
  %824 = vmatpush2.msra.mxu0 %v237
  %825 = vmatprep.subr.mxu0 0.0
  %826 = vmatpush2.msra.mxu0 %v236
  %827 = vmatprep.subr.mxu0 0.0
  %828 = vmatpush2.msra.mxu0 %v235
  %829 = vmatprep.subr.mxu0 0.0
  %830 = vmatpush2.msra.mxu0 %v234
  %831 = vmatprep.subr.mxu0 0.0
  %832 = vmatpush2.msra.mxu0 %v233
  %833 = vmatprep.subr.mxu0 0.0
  %834 = vmatpush2.msra.mxu0 %v232
  %835 = vmatprep.subr.mxu0 0.0
  %836 = vmatpush2.msra.mxu0 %v231
  %837 = vmatprep.subr.mxu0 0.0
  %838 = vmatpush2.msra.mxu0 %v230
  %839 = vmatprep.subr.mxu0 0.0
  %840 = vmatpush2.msra.mxu0 %v229
  %841 = vmatprep.subr.mxu0 0.0
  %842 = vmatpush2.msra.mxu0 %v228
  %843 = vmatprep.subr.mxu0 0.0
  %844 = vmatpush2.msra.mxu0 %v227
  %845 = vmatprep.mubr.f32.mxu0 %v39
  %846 = vmatmul.mubr.f32.gmra.mxu0 %v38
  %v847 = vpop.f32.mrf.mxu0
  %v848 = vadd.f32 %v778, %v847
  %v849 = vpop.f32.mrf.mxu0
  %850 = vdwg.mxu0
  %851 = vmatprep.subr.mxu0 0.0
  %852 = vmatpush1.msra.mxu0 %v258
  %853 = vmatprep.subr.mxu0 0.0
  %854 = vmatpush1.msra.mxu0 %v257
  %855 = vmatprep.subr.mxu0 0.0
  %856 = vmatpush1.msra.mxu0 %v256
  %857 = vmatprep.subr.mxu0 0.0
  %858 = vmatpush1.msra.mxu0 %v255
  %859 = vmatprep.subr.mxu0 0.0
  %860 = vmatpush1.msra.mxu0 %v254
  %861 = vmatprep.subr.mxu0 0.0
  %862 = vmatpush1.msra.mxu0 %v253
  %863 = vmatprep.subr.mxu0 0.0
  %864 = vmatpush1.msra.mxu0 %v252
  %865 = vmatprep.subr.mxu0 0.0
  %866 = vmatpush1.msra.mxu0 %v251
  %867 = vmatprep.subr.mxu0 0.0
  %868 = vmatpush1.msra.mxu0 %v250
  %869 = vmatprep.subr.mxu0 0.0
  %870 = vmatpush1.msra.mxu0 %v249
  %871 = vmatprep.subr.mxu0 0.0
  %872 = vmatpush1.msra.mxu0 %v248
  %873 = vmatprep.subr.mxu0 0.0
  %874 = vmatpush1.msra.mxu0 %v247
  %875 = vmatprep.subr.mxu0 0.0
  %876 = vmatpush1.msra.mxu0 %v246
  %877 = vmatprep.subr.mxu0 0.0
  %878 = vmatpush1.msra.mxu0 %v245
  %879 = vmatprep.subr.mxu0 0.0
  %880 = vmatpush1.msra.mxu0 %v244
  %881 = vmatprep.subr.mxu0 0.0
  %882 = vmatpush1.msra.mxu0 %v243
  %883 = vmatprep.subr.mxu0 0.0
  %884 = vmatpush2.msra.mxu0 %v274
  %885 = vmatprep.subr.mxu0 0.0
  %886 = vmatpush2.msra.mxu0 %v273
  %887 = vmatprep.subr.mxu0 0.0
  %888 = vmatpush2.msra.mxu0 %v272
  %889 = vmatprep.subr.mxu0 0.0
  %890 = vmatpush2.msra.mxu0 %v271
  %891 = vmatprep.subr.mxu0 0.0
  %892 = vmatpush2.msra.mxu0 %v270
  %893 = vmatprep.subr.mxu0 0.0
  %894 = vmatpush2.msra.mxu0 %v269
  %895 = vmatprep.subr.mxu0 0.0
  %896 = vmatpush2.msra.mxu0 %v268
  %897 = vmatprep.subr.mxu0 0.0
  %898 = vmatpush2.msra.mxu0 %v267
  %899 = vmatprep.subr.mxu0 0.0
  %900 = vmatpush2.msra.mxu0 %v266
  %901 = vmatprep.subr.mxu0 0.0
  %902 = vmatpush2.msra.mxu0 %v265
  %903 = vmatprep.subr.mxu0 0.0
  %904 = vmatpush2.msra.mxu0 %v264
  %905 = vmatprep.subr.mxu0 0.0
  %906 = vmatpush2.msra.mxu0 %v263
  %907 = vmatprep.subr.mxu0 0.0
  %908 = vmatpush2.msra.mxu0 %v262
  %909 = vmatprep.subr.mxu0 0.0
  %910 = vmatpush2.msra.mxu0 %v261
  %911 = vmatprep.subr.mxu0 0.0
  %912 = vmatpush2.msra.mxu0 %v260
  %913 = vmatprep.subr.mxu0 0.0
  %914 = vmatpush2.msra.mxu0 %v259
  %915 = vmatprep.mubr.f32.mxu0 %v41
  %916 = vmatmul.mubr.f32.gmra.mxu0 %v40
  %v917 = vpop.f32.mrf.mxu0
  %v918 = vadd.f32 %v848, %v917
  %v919 = vpop.f32.mrf.mxu0
  %920 = vdwg.mxu0
  %921 = vmatprep.subr.mxu0 0.0
  %922 = vmatpush1.msra.mxu0 %v290
  %923 = vmatprep.subr.mxu0 0.0
  %924 = vmatpush1.msra.mxu0 %v289
  %925 = vmatprep.subr.mxu0 0.0
  %926 = vmatpush1.msra.mxu0 %v288
  %927 = vmatprep.subr.mxu0 0.0
  %928 = vmatpush1.msra.mxu0 %v287
  %929 = vmatprep.subr.mxu0 0.0
  %930 = vmatpush1.msra.mxu0 %v286
  %931 = vmatprep.subr.mxu0 0.0
  %932 = vmatpush1.msra.mxu0 %v285
  %933 = vmatprep.subr.mxu0 0.0
  %934 = vmatpush1.msra.mxu0 %v284
  %935 = vmatprep.subr.mxu0 0.0
  %936 = vmatpush1.msra.mxu0 %v283
  %937 = vmatprep.subr.mxu0 0.0
  %938 = vmatpush1.msra.mxu0 %v282
  %939 = vmatprep.subr.mxu0 0.0
  %940 = vmatpush1.msra.mxu0 %v281
  %941 = vmatprep.subr.mxu0 0.0
  %942 = vmatpush1.msra.mxu0 %v280
  %943 = vmatprep.subr.mxu0 0.0
  %944 = vmatpush1.msra.mxu0 %v279
  %945 = vmatprep.subr.mxu0 0.0
  %946 = vmatpush1.msra.mxu0 %v278
  %947 = vmatprep.subr.mxu0 0.0
  %948 = vmatpush1.msra.mxu0 %v277
  %949 = vmatprep.subr.mxu0 0.0
  %950 = vmatpush1.msra.mxu0 %v276
  %951 = vmatprep.subr.mxu0 0.0
  %952 = vmatpush1.msra.mxu0 %v275
  %953 = vmatprep.subr.mxu0 0.0
  %954 = vmatpush2.msra.mxu0 %v306
  %955 = vmatprep.subr.mxu0 0.0
  %956 = vmatpush2.msra.mxu0 %v305
  %957 = vmatprep.subr.mxu0 0.0
  %958 = vmatpush2.msra.mxu0 %v304
  %959 = vmatprep.subr.mxu0 0.0
  %960 = vmatpush2.msra.mxu0 %v303
  %961 = vmatprep.subr.mxu0 0.0
  %962 = vmatpush2.msra.mxu0 %v302
  %963 = vmatprep.subr.mxu0 0.0
  %964 = vmatpush2.msra.mxu0 %v301
  %965 = vmatprep.subr.mxu0 0.0
  %966 = vmatpush2.msra.mxu0 %v300
  %967 = vmatprep.subr.mxu0 0.0
  %968 = vmatpush2.msra.mxu0 %v299
  %969 = vmatprep.subr.mxu0 0.0
  %970 = vmatpush2.msra.mxu0 %v298
  %971 = vmatprep.subr.mxu0 0.0
  %972 = vmatpush2.msra.mxu0 %v297
  %973 = vmatprep.subr.mxu0 0.0
  %974 = vmatpush2.msra.mxu0 %v296
  %975 = vmatprep.subr.mxu0 0.0
  %976 = vmatpush2.msra.mxu0 %v295
  %977 = vmatprep.subr.mxu0 0.0
  %978 = vmatpush2.msra.mxu0 %v294
  %979 = vmatprep.subr.mxu0 0.0
  %980 = vmatpush2.msra.mxu0 %v293
  %981 = vmatprep.subr.mxu0 0.0
  %982 = vmatpush2.msra.mxu0 %v292
  %983 = vmatprep.subr.mxu0 0.0
  %984 = vmatpush2.msra.mxu0 %v291
  %985 = vmatprep.mubr.f32.mxu0 %v43
  %986 = vmatmul.mubr.f32.gmra.mxu0 %v42
  %v987 = vpop.f32.mrf.mxu0
  %v988 = vadd.f32 %v918, %v987
  %v989 = vpop.f32.mrf.mxu0
  %990 = vdwg.mxu0
  %991 = vmatprep.subr.mxu0 0.0
  %992 = vmatpush1.msra.mxu0 %v322
  %993 = vmatprep.subr.mxu0 0.0
  %994 = vmatpush1.msra.mxu0 %v321
  %995 = vmatprep.subr.mxu0 0.0
  %996 = vmatpush1.msra.mxu0 %v320
  %997 = vmatprep.subr.mxu0 0.0
  %998 = vmatpush1.msra.mxu0 %v319
  %999 = vmatprep.subr.mxu0 0.0
  %1000 = vmatpush1.msra.mxu0 %v318
  %1001 = vmatprep.subr.mxu0 0.0
  %1002 = vmatpush1.msra.mxu0 %v317
  %1003 = vmatprep.subr.mxu0 0.0
  %1004 = vmatpush1.msra.mxu0 %v316
  %1005 = vmatprep.subr.mxu0 0.0
  %1006 = vmatpush1.msra.mxu0 %v315
  %1007 = vmatprep.subr.mxu0 0.0
  %1008 = vmatpush1.msra.mxu0 %v314
  %1009 = vmatprep.subr.mxu0 0.0
  %1010 = vmatpush1.msra.mxu0 %v313
  %1011 = vmatprep.subr.mxu0 0.0
  %1012 = vmatpush1.msra.mxu0 %v312
  %1013 = vmatprep.subr.mxu0 0.0
  %1014 = vmatpush1.msra.mxu0 %v311
  %1015 = vmatprep.subr.mxu0 0.0
  %1016 = vmatpush1.msra.mxu0 %v310
  %1017 = vmatprep.subr.mxu0 0.0
  %1018 = vmatpush1.msra.mxu0 %v309
  %1019 = vmatprep.subr.mxu0 0.0
  %1020 = vmatpush1.msra.mxu0 %v308
  %1021 = vmatprep.subr.mxu0 0.0
  %1022 = vmatpush1.msra.mxu0 %v307
  %1023 = vmatprep.subr.mxu0 0.0
  %1024 = vmatpush2.msra.mxu0 %v338
  %1025 = vmatprep.subr.mxu0 0.0
  %1026 = vmatpush2.msra.mxu0 %v337
  %1027 = vmatprep.subr.mxu0 0.0
  %1028 = vmatpush2.msra.mxu0 %v336
  %1029 = vmatprep.subr.mxu0 0.0
  %1030 = vmatpush2.msra.mxu0 %v335
  %1031 = vmatprep.subr.mxu0 0.0
  %1032 = vmatpush2.msra.mxu0 %v334
  %1033 = vmatprep.subr.mxu0 0.0
  %1034 = vmatpush2.msra.mxu0 %v333
  %1035 = vmatprep.subr.mxu0 0.0
  %1036 = vmatpush2.msra.mxu0 %v332
  %1037 = vmatprep.subr.mxu0 0.0
  %1038 = vmatpush2.msra.mxu0 %v331
  %1039 = vmatprep.subr.mxu0 0.0
  %1040 = vmatpush2.msra.mxu0 %v330
  %1041 = vmatprep.subr.mxu0 0.0
  %1042 = vmatpush2.msra.mxu0 %v329
  %1043 = vmatprep.subr.mxu0 0.0
  %1044 = vmatpush2.msra.mxu0 %v328
  %1045 = vmatprep.subr.mxu0 0.0
  %1046 = vmatpush2.msra.mxu0 %v327
  %1047 = vmatprep.subr.mxu0 0.0
  %1048 = vmatpush2.msra.mxu0 %v326
  %1049 = vmatprep.subr.mxu0 0.0
  %1050 = vmatpush2.msra.mxu0 %v325
  %1051 = vmatprep.subr.mxu0 0.0
  %1052 = vmatpush2.msra.mxu0 %v324
  %1053 = vmatprep.subr.mxu0 0.0
  %1054 = vmatpush2.msra.mxu0 %v323
  %1055 = vmatprep.mubr.f32.mxu0 %v45
  %1056 = vmatmul.mubr.f32.gmra.mxu0 %v44
  %v1057 = vpop.f32.mrf.mxu0
  %v1058 = vadd.f32 %v988, %v1057
  %v1059 = vpop.f32.mrf.mxu0
  %1060 = vdwg.mxu0
  %1061 = vmatprep.subr.mxu0 0.0
  %1062 = vmatpush1.msra.mxu0 %v354
  %1063 = vmatprep.subr.mxu0 0.0
  %1064 = vmatpush1.msra.mxu0 %v353
  %1065 = vmatprep.subr.mxu0 0.0
  %1066 = vmatpush1.msra.mxu0 %v352
  %1067 = vmatprep.subr.mxu0 0.0
  %1068 = vmatpush1.msra.mxu0 %v351
  %1069 = vmatprep.subr.mxu0 0.0
  %1070 = vmatpush1.msra.mxu0 %v350
  %1071 = vmatprep.subr.mxu0 0.0
  %1072 = vmatpush1.msra.mxu0 %v349
  %1073 = vmatprep.subr.mxu0 0.0
  %1074 = vmatpush1.msra.mxu0 %v348
  %1075 = vmatprep.subr.mxu0 0.0
  %1076 = vmatpush1.msra.mxu0 %v347
  %1077 = vmatprep.subr.mxu0 0.0
  %1078 = vmatpush1.msra.mxu0 %v346
  %1079 = vmatprep.subr.mxu0 0.0
  %1080 = vmatpush1.msra.mxu0 %v345
  %1081 = vmatprep.subr.mxu0 0.0
  %1082 = vmatpush1.msra.mxu0 %v344
  %1083 = vmatprep.subr.mxu0 0.0
  %1084 = vmatpush1.msra.mxu0 %v343
  %1085 = vmatprep.subr.mxu0 0.0
  %1086 = vmatpush1.msra.mxu0 %v342
  %1087 = vmatprep.subr.mxu0 0.0
  %1088 = vmatpush1.msra.mxu0 %v341
  %1089 = vmatprep.subr.mxu0 0.0
  %1090 = vmatpush1.msra.mxu0 %v340
  %1091 = vmatprep.subr.mxu0 0.0
  %1092 = vmatpush1.msra.mxu0 %v339
  %1093 = vmatprep.subr.mxu0 0.0
  %1094 = vmatpush2.msra.mxu0 %v370
  %1095 = vmatprep.subr.mxu0 0.0
  %1096 = vmatpush2.msra.mxu0 %v369
  %1097 = vmatprep.subr.mxu0 0.0
  %1098 = vmatpush2.msra.mxu0 %v368
  %1099 = vmatprep.subr.mxu0 0.0
  %1100 = vmatpush2.msra.mxu0 %v367
  %1101 = vmatprep.subr.mxu0 0.0
  %1102 = vmatpush2.msra.mxu0 %v366
  %1103 = vmatprep.subr.mxu0 0.0
  %1104 = vmatpush2.msra.mxu0 %v365
  %1105 = vmatprep.subr.mxu0 0.0
  %1106 = vmatpush2.msra.mxu0 %v364
  %1107 = vmatprep.subr.mxu0 0.0
  %1108 = vmatpush2.msra.mxu0 %v363
  %1109 = vmatprep.subr.mxu0 0.0
  %1110 = vmatpush2.msra.mxu0 %v362
  %1111 = vmatprep.subr.mxu0 0.0
  %1112 = vmatpush2.msra.mxu0 %v361
  %1113 = vmatprep.subr.mxu0 0.0
  %1114 = vmatpush2.msra.mxu0 %v360
  %1115 = vmatprep.subr.mxu0 0.0
  %1116 = vmatpush2.msra.mxu0 %v359
  %1117 = vmatprep.subr.mxu0 0.0
  %1118 = vmatpush2.msra.mxu0 %v358
  %1119 = vmatprep.subr.mxu0 0.0
  %1120 = vmatpush2.msra.mxu0 %v357
  %1121 = vmatprep.subr.mxu0 0.0
  %1122 = vmatpush2.msra.mxu0 %v356
  %1123 = vmatprep.subr.mxu0 0.0
  %1124 = vmatpush2.msra.mxu0 %v355
  %1125 = vmatprep.mubr.f32.mxu0 %v47
  %1126 = vmatmul.mubr.f32.gmra.mxu0 %v46
  %v1127 = vpop.f32.mrf.mxu0
  %v1128 = vadd.f32 %v1058, %v1127
  %v1129 = vpop.f32.mrf.mxu0
  %1130 = vdwg.mxu0
  %1131 = vmatprep.subr.mxu0 0.0
  %1132 = vmatpush1.msra.mxu0 %v386
  %1133 = vmatprep.subr.mxu0 0.0
  %1134 = vmatpush1.msra.mxu0 %v385
  %1135 = vmatprep.subr.mxu0 0.0
  %1136 = vmatpush1.msra.mxu0 %v384
  %1137 = vmatprep.subr.mxu0 0.0
  %1138 = vmatpush1.msra.mxu0 %v383
  %1139 = vmatprep.subr.mxu0 0.0
  %1140 = vmatpush1.msra.mxu0 %v382
  %1141 = vmatprep.subr.mxu0 0.0
  %1142 = vmatpush1.msra.mxu0 %v381
  %1143 = vmatprep.subr.mxu0 0.0
  %1144 = vmatpush1.msra.mxu0 %v380
  %1145 = vmatprep.subr.mxu0 0.0
  %1146 = vmatpush1.msra.mxu0 %v379
  %1147 = vmatprep.subr.mxu0 0.0
  %1148 = vmatpush1.msra.mxu0 %v378
  %1149 = vmatprep.subr.mxu0 0.0
  %1150 = vmatpush1.msra.mxu0 %v377
  %1151 = vmatprep.subr.mxu0 0.0
  %1152 = vmatpush1.msra.mxu0 %v376
  %1153 = vmatprep.subr.mxu0 0.0
  %1154 = vmatpush1.msra.mxu0 %v375
  %1155 = vmatprep.subr.mxu0 0.0
  %1156 = vmatpush1.msra.mxu0 %v374
  %1157 = vmatprep.subr.mxu0 0.0
  %1158 = vmatpush1.msra.mxu0 %v373
  %1159 = vmatprep.subr.mxu0 0.0
  %1160 = vmatpush1.msra.mxu0 %v372
  %1161 = vmatprep.subr.mxu0 0.0
  %1162 = vmatpush1.msra.mxu0 %v371
  %1163 = vmatprep.subr.mxu0 0.0
  %1164 = vmatpush2.msra.mxu0 %v402
  %1165 = vmatprep.subr.mxu0 0.0
  %1166 = vmatpush2.msra.mxu0 %v401
  %1167 = vmatprep.subr.mxu0 0.0
  %1168 = vmatpush2.msra.mxu0 %v400
  %1169 = vmatprep.subr.mxu0 0.0
  %1170 = vmatpush2.msra.mxu0 %v399
  %1171 = vmatprep.subr.mxu0 0.0
  %1172 = vmatpush2.msra.mxu0 %v398
  %1173 = vmatprep.subr.mxu0 0.0
  %1174 = vmatpush2.msra.mxu0 %v397
  %1175 = vmatprep.subr.mxu0 0.0
  %1176 = vmatpush2.msra.mxu0 %v396
  %1177 = vmatprep.subr.mxu0 0.0
  %1178 = vmatpush2.msra.mxu0 %v395
  %1179 = vmatprep.subr.mxu0 0.0
  %1180 = vmatpush2.msra.mxu0 %v394
  %1181 = vmatprep.subr.mxu0 0.0
  %1182 = vmatpush2.msra.mxu0 %v393
  %1183 = vmatprep.subr.mxu0 0.0
  %1184 = vmatpush2.msra.mxu0 %v392
  %1185 = vmatprep.subr.mxu0 0.0
  %1186 = vmatpush2.msra.mxu0 %v391
  %1187 = vmatprep.subr.mxu0 0.0
  %1188 = vmatpush2.msra.mxu0 %v390
  %1189 = vmatprep.subr.mxu0 0.0
  %1190 = vmatpush2.msra.mxu0 %v389
  %1191 = vmatprep.subr.mxu0 0.0
  %1192 = vmatpush2.msra.mxu0 %v388
  %1193 = vmatprep.subr.mxu0 0.0
  %1194 = vmatpush2.msra.mxu0 %v387
  %1195 = vmatprep.mubr.f32.mxu0 %v49
  %1196 = vmatmul.mubr.f32.gmra.mxu0 %v48
  %v1197 = vpop.f32.mrf.mxu0
  %v1198 = vadd.f32 %v1128, %v1197
  %v1199 = vpop.f32.mrf.mxu0
  %1200 = vdwg.mxu0
  %1201 = vmatprep.subr.mxu0 0.0
  %1202 = vmatpush1.msra.mxu0 0.0
  %1203 = vmatprep.subr.mxu0 0.0
  %1204 = vmatpush1.msra.mxu0 0.0
  %1205 = vmatprep.subr.mxu0 0.0
  %1206 = vmatpush1.msra.mxu0 0.0
  %1207 = vmatprep.subr.mxu0 0.0
  %1208 = vmatpush1.msra.mxu0 %v429
  %1209 = vmatprep.subr.mxu0 0.0
  %1210 = vmatpush1.msra.mxu0 %v414
  %1211 = vmatprep.subr.mxu0 0.0
  %1212 = vmatpush1.msra.mxu0 %v413
  %1213 = vmatprep.subr.mxu0 0.0
  %1214 = vmatpush1.msra.mxu0 %v412
  %1215 = vmatprep.subr.mxu0 0.0
  %1216 = vmatpush1.msra.mxu0 %v411
  %1217 = vmatprep.subr.mxu0 0.0
  %1218 = vmatpush1.msra.mxu0 %v410
  %1219 = vmatprep.subr.mxu0 0.0
  %1220 = vmatpush1.msra.mxu0 %v409
  %1221 = vmatprep.subr.mxu0 0.0
  %1222 = vmatpush1.msra.mxu0 %v408
  %1223 = vmatprep.subr.mxu0 0.0
  %1224 = vmatpush1.msra.mxu0 %v407
  %1225 = vmatprep.subr.mxu0 0.0
  %1226 = vmatpush1.msra.mxu0 %v406
  %1227 = vmatprep.subr.mxu0 0.0
  %1228 = vmatpush1.msra.mxu0 %v405
  %1229 = vmatprep.subr.mxu0 0.0
  %1230 = vmatpush1.msra.mxu0 %v404
  %1231 = vmatprep.subr.mxu0 0.0
  %1232 = vmatpush1.msra.mxu0 %v403
  %1233 = vmatprep.subr.mxu0 0.0
  %1234 = vmatpush2.msra.mxu0 0.0
  %1235 = vmatprep.subr.mxu0 0.0
  %1236 = vmatpush2.msra.mxu0 0.0
  %1237 = vmatprep.subr.mxu0 0.0
  %1238 = vmatpush2.msra.mxu0 0.0
  %1239 = vmatprep.subr.mxu0 0.0
  %1240 = vmatpush2.msra.mxu0 0.0
  %1241 = vmatprep.subr.mxu0 0.0
  %1242 = vmatpush2.msra.mxu0 0.0
  %1243 = vmatprep.subr.mxu0 0.0
  %1244 = vmatpush2.msra.mxu0 0.0
  %1245 = vmatprep.subr.mxu0 0.0
  %1246 = vmatpush2.msra.mxu0 0.0
  %1247 = vmatprep.subr.mxu0 0.0
  %1248 = vmatpush2.msra.mxu0 0.0
  %1249 = vmatprep.subr.mxu0 0.0
  %1250 = vmatpush2.msra.mxu0 0.0
  %1251 = vmatprep.subr.mxu0 0.0
  %1252 = vmatpush2.msra.mxu0 0.0
  %1253 = vmatprep.subr.mxu0 0.0
  %1254 = vmatpush2.msra.mxu0 0.0
  %1255 = vmatprep.subr.mxu0 0.0
  %1256 = vmatpush2.msra.mxu0 0.0
  %1257 = vmatprep.subr.mxu0 0.0
  %1258 = vmatpush2.msra.mxu0 0.0
  %1259 = vmatprep.subr.mxu0 0.0
  %1260 = vmatpush2.msra.mxu0 0.0
  %1261 = vmatprep.subr.mxu0 0.0
  %1262 = vmatpush2.msra.mxu0 0.0
  %1263 = vmatprep.subr.mxu0 0.0
  %1264 = vmatpush2.msra.mxu0 0.0
  %1265 = vmatprep.mubr.f32.mxu0 0.0
  %1266 = vmatmul.mubr.f32.gmra.mxu0 %v425
  %v1267 = vpop.f32.mrf.mxu0
  %v1268 = vadd.f32 %v1198, %v1267
  %v1269 = vpop.f32.mrf.mxu0
  %1270 = vdwg.mxu0
  %v1271 = vmax.f32 %v1268, 0.0
  %v1272 = vld [vmem:[%s3] sm:$0xff]
  %v1273 = vld [vmem:[%s3 + $0x8] sm:$0xff]
  %v1274 = vld [vmem:[%s3 + $0x10] sm:$0xff]
  %v1275 = vld [vmem:[%s3 + $0x18] sm:$0xff]
  %v1276 = vld [vmem:[%s3 + $0x20] sm:$0xff]
  %v1277 = vld [vmem:[%s4] sm:$0x1]
  %v1279 = vlaneseq
  %v1280 = vshrl.u32 %v1279, 7
  %v1281 = vsub.s32 0, %v1280
  %v1282 = vrot.slane %v1277, %v1281
  %vm1284 = vcmask 326656
  %v1286 = vsel %vm1284, %v1271, 0
  %1288 = vmatprep.subr.mxu0 0.0
  %1289 = vmatpush1.msra.mxu0 0.0
  %1290 = vmatprep.subr.mxu0 0.0
  %1291 = vmatpush1.msra.mxu0 0.0
  %1292 = vmatprep.subr.mxu0 0.0
  %1293 = vmatpush1.msra.mxu0 0.0
  %1294 = vmatprep.subr.mxu0 0.0
  %1295 = vmatpush1.msra.mxu0 0.0
  %1296 = vmatprep.subr.mxu0 0.0
  %1297 = vmatpush1.msra.mxu0 0.0
  %1298 = vmatprep.subr.mxu0 0.0
  %1299 = vmatpush1.msra.mxu0 0.0
  %1300 = vmatprep.subr.mxu0 0.0
  %1301 = vmatpush1.msra.mxu0 0.0
  %1302 = vmatprep.subr.mxu0 0.0
  %1303 = vmatpush1.msra.mxu0 0.0
  %1304 = vmatprep.subr.mxu0 0.0
  %1305 = vmatpush1.msra.mxu0 0.0
  %1306 = vmatprep.subr.mxu0 0.0
  %1307 = vmatpush1.msra.mxu0 0.0
  %1308 = vmatprep.subr.mxu0 0.0
  %1309 = vmatpush1.msra.mxu0 0.0
  %1310 = vmatprep.subr.mxu0 0.0
  %1311 = vmatpush1.msra.mxu0 %v1276
  %1312 = vmatprep.subr.mxu0 0.0
  %1313 = vmatpush1.msra.mxu0 %v1275
  %1314 = vmatprep.subr.mxu0 0.0
  %1315 = vmatpush1.msra.mxu0 %v1274
  %1316 = vmatprep.subr.mxu0 0.0
  %1317 = vmatpush1.msra.mxu0 %v1273
  %1318 = vmatprep.subr.mxu0 0.0
  %1319 = vmatpush1.msra.mxu0 %v1272
  %1320 = vmatprep.subr.mxu0 0.0
  %1321 = vmatpush2.msra.mxu0 0.0
  %1322 = vmatprep.subr.mxu0 0.0
  %1323 = vmatpush2.msra.mxu0 0.0
  %1324 = vmatprep.subr.mxu0 0.0
  %1325 = vmatpush2.msra.mxu0 0.0
  %1326 = vmatprep.subr.mxu0 0.0
  %1327 = vmatpush2.msra.mxu0 0.0
  %1328 = vmatprep.subr.mxu0 0.0
  %1329 = vmatpush2.msra.mxu0 0.0
  %1330 = vmatprep.subr.mxu0 0.0
  %1331 = vmatpush2.msra.mxu0 0.0
  %1332 = vmatprep.subr.mxu0 0.0
  %1333 = vmatpush2.msra.mxu0 0.0
  %1334 = vmatprep.subr.mxu0 0.0
  %1335 = vmatpush2.msra.mxu0 0.0
  %1336 = vmatprep.subr.mxu0 0.0
  %1337 = vmatpush2.msra.mxu0 0.0
  %1338 = vmatprep.subr.mxu0 0.0
  %1339 = vmatpush2.msra.mxu0 0.0
  %1340 = vmatprep.subr.mxu0 0.0
  %1341 = vmatpush2.msra.mxu0 0.0
  %1342 = vmatprep.subr.mxu0 0.0
  %1343 = vmatpush2.msra.mxu0 0.0
  %1344 = vmatprep.subr.mxu0 0.0
  %1345 = vmatpush2.msra.mxu0 0.0
  %1346 = vmatprep.subr.mxu0 0.0
  %1347 = vmatpush2.msra.mxu0 0.0
  %1348 = vmatprep.subr.mxu0 0.0
  %1349 = vmatpush2.msra.mxu0 0.0
  %1350 = vmatprep.subr.mxu0 0.0
  %1351 = vmatpush2.msra.mxu0 0.0
  %1352 = vmatprep.mubr.f32.mxu0 0.0
  %1353 = vmatmul.mubr.f32.gmra.mxu0 %v1286
  %v1354 = vpop.f32.mrf.mxu0
  %v1355 = vadd.f32 %v1282, %v1354
  %v1356 = vpop.f32.mrf.mxu0
  %1357 = vdwg.mxu0
  %v1358 = vmax.f32 %v1355, 0.0
  %v1359 = vld [vmem:[%s5] sm:$0xff]
  %v1360 = vld [vmem:[%s5 + $0x8] sm:$0xff]
  %v1361 = vld [vmem:[%s5 + $0x10] sm:$0xff]
  %v1362 = vld [vmem:[%s5 + $0x18] sm:$0xff]
  %v1363 = vld [vmem:[%s5 + $0x20] sm:$0xff]
  %v1364 = vld [vmem:[#allocation2] sm:$0x1]
  %v1366 = vlaneseq
  %v1367 = vshrl.u32 %v1366, 7
  %v1368 = vsub.s32 0, %v1367
  %v1369 = vrot.slane %v1364, %v1368
  %v1372 = vsel %vm1284, %v1358, 0
  %1374 = vmatprep.subr.mxu0 0.0
  %1375 = vmatpush1.msra.mxu0 0.0
  %1376 = vmatprep.subr.mxu0 0.0
  %1377 = vmatpush1.msra.mxu0 0.0
  %1378 = vmatprep.subr.mxu0 0.0
  %1379 = vmatpush1.msra.mxu0 0.0
  %1380 = vmatprep.subr.mxu0 0.0
  %1381 = vmatpush1.msra.mxu0 0.0
  %1382 = vmatprep.subr.mxu0 0.0
  %1383 = vmatpush1.msra.mxu0 0.0
  %1384 = vmatprep.subr.mxu0 0.0
  %1385 = vmatpush1.msra.mxu0 0.0
  %1386 = vmatprep.subr.mxu0 0.0
  %1387 = vmatpush1.msra.mxu0 0.0
  %1388 = vmatprep.subr.mxu0 0.0
  %1389 = vmatpush1.msra.mxu0 0.0
  %1390 = vmatprep.subr.mxu0 0.0
  %1391 = vmatpush1.msra.mxu0 0.0
  %1392 = vmatprep.subr.mxu0 0.0
  %1393 = vmatpush1.msra.mxu0 0.0
  %1394 = vmatprep.subr.mxu0 0.0
  %1395 = vmatpush1.msra.mxu0 0.0
  %1396 = vmatprep.subr.mxu0 0.0
  %1397 = vmatpush1.msra.mxu0 %v1363
  %1398 = vmatprep.subr.mxu0 0.0
  %1399 = vmatpush1.msra.mxu0 %v1362
  %1400 = vmatprep.subr.mxu0 0.0
  %1401 = vmatpush1.msra.mxu0 %v1361
  %1402 = vmatprep.subr.mxu0 0.0
  %1403 = vmatpush1.msra.mxu0 %v1360
  %1404 = vmatprep.subr.mxu0 0.0
  %1405 = vmatpush1.msra.mxu0 %v1359
  %1406 = vmatprep.subr.mxu0 0.0
  %1407 = vmatpush2.msra.mxu0 0.0
  %1408 = vmatprep.subr.mxu0 0.0
  %1409 = vmatpush2.msra.mxu0 0.0
  %1410 = vmatprep.subr.mxu0 0.0
  %1411 = vmatpush2.msra.mxu0 0.0
  %1412 = vmatprep.subr.mxu0 0.0
  %1413 = vmatpush2.msra.mxu0 0.0
  %1414 = vmatprep.subr.mxu0 0.0
  %1415 = vmatpush2.msra.mxu0 0.0
  %1416 = vmatprep.subr.mxu0 0.0
  %1417 = vmatpush2.msra.mxu0 0.0
  %1418 = vmatprep.subr.mxu0 0.0
  %1419 = vmatpush2.msra.mxu0 0.0
  %1420 = vmatprep.subr.mxu0 0.0
  %1421 = vmatpush2.msra.mxu0 0.0
  %1422 = vmatprep.subr.mxu0 0.0
  %1423 = vmatpush2.msra.mxu0 0.0
  %1424 = vmatprep.subr.mxu0 0.0
  %1425 = vmatpush2.msra.mxu0 0.0
  %1426 = vmatprep.subr.mxu0 0.0
  %1427 = vmatpush2.msra.mxu0 0.0
  %1428 = vmatprep.subr.mxu0 0.0
  %1429 = vmatpush2.msra.mxu0 0.0
  %1430 = vmatprep.subr.mxu0 0.0
  %1431 = vmatpush2.msra.mxu0 0.0
  %1432 = vmatprep.subr.mxu0 0.0
  %1433 = vmatpush2.msra.mxu0 0.0
  %1434 = vmatprep.subr.mxu0 0.0
  %1435 = vmatpush2.msra.mxu0 0.0
  %1436 = vmatprep.subr.mxu0 0.0
  %1437 = vmatpush2.msra.mxu0 0.0
  %1438 = vmatprep.mubr.f32.mxu0 0.0
  %1439 = vmatmul.mubr.f32.gmra.mxu0 %v1372
  %v1440 = vpop.f32.mrf.mxu0
  %v1441 = vadd.f32 %v1369, %v1440
  %v1442 = vpop.f32.mrf.mxu0
  %1443 = vdwg.mxu0
  %vm1444 = vcmask 7168
  %1445 = vst.msk [vmem:[%s7] sm:$0xff] %vm1444, %v1441
  // Predicated region
  $region30: #{tpu_custom_call.1} parent=0 // pred_check
    _
  $region31: #{tpu_custom_call.1} parent=0 // pred_check_branch
    %1447 = sbr.rel (0) target = $region33
  $region32: #{tpu_custom_call.1} parent=0 // pred_region
    _
  $region33: #{tpu_custom_call.1} parent=0 // pred_fallthru
    _
  // Predicated region
  $region34: #{tpu_custom_call.1} parent=0 // pred_check
    _
  $region35: #{tpu_custom_call.1} parent=0 // pred_check_branch
    %1449 = sbr.rel (0) target = $region37
  $region36: #{tpu_custom_call.1} parent=0 // pred_region
    _
  $region37: #{tpu_custom_call.1} parent=0 // pred_fallthru
    _

</llo_original>
